<compile_context>
chip_gen: v7x
topology: tpu7x:2x2x1
jax: 0.10.0
libtpu: 0.0.40
codegen_flags: <defaults>
</compile_context>

<pallas_src>
import jax
import jax.numpy as jnp
from jax.experimental import pallas as pl
from jax.experimental.pallas import tpu as pltpu


def _round_up(v, m):
    return ((v + m - 1) // m) * m


# ----------------------------------------------------------------------------
# Pallas kernel: full VAE forward for one batch tile
# (encoder -> fused latent heads -> reparameterize -> decoder)
# ----------------------------------------------------------------------------
def vae_dense_kernel(
    x_ref, eps_ref,
    w_en0_ref, b_en0_ref,
    w_en1_ref, b_en1_ref,
    w_lat_ref, b_lat_ref,          # fused, lane-padded [mu || log_var || 0...]
    w_de0_ref, b_de0_ref,
    w_de1_ref, b_de1_ref,
    w_de2_ref, b_de2_ref,
    meanlv_ref, gen_ref,
):
    z_dim = eps_ref.shape[-1]

    # ---- encoder ----  (x is already bf16; cast happened in the wrapper)
    x = x_ref[...]                                                        # (TM, 784) bf16
    h0 = jnp.dot(x, w_en0_ref[...], preferred_element_type=jnp.float32)
    h0 = jnp.maximum(h0 + b_en0_ref[...], 0.0)                            # (TM, 256)

    h1 = jnp.dot(h0.astype(jnp.bfloat16), w_en1_ref[...],
                 preferred_element_type=jnp.float32)
    h1 = jnp.maximum(h1 + b_en1_ref[...], 0.0)                            # (TM, 128)

    # Fused latent heads: one lane-dense (128-wide) matmul produces
    # [mu || log_var || zero-pad]; stored unmasked, sliced in the wrapper.
    lat = jnp.dot(h1.astype(jnp.bfloat16), w_lat_ref[...],
                  preferred_element_type=jnp.float32) + b_lat_ref[...]    # (TM, LAT)
    meanlv_ref[...] = lat

    mu = lat[:, :z_dim]
    lv = lat[:, z_dim:2 * z_dim]

    # ---- re-parameterize (matches the module): z = mu + exp(log_var) * eps ----
    z = mu + jnp.exp(lv) * eps_ref[...]                                   # (TM, z)

    # ---- decoder ----
    d0 = jnp.dot(z.astype(jnp.bfloat16), w_de0_ref[...],
                 preferred_element_type=jnp.float32)
    d0 = jnp.maximum(d0 + b_de0_ref[...], 0.0)                            # (TM, 128)

    d1 = jnp.dot(d0.astype(jnp.bfloat16), w_de1_ref[...],
                 preferred_element_type=jnp.float32)
    d1 = jnp.maximum(d1 + b_de1_ref[...], 0.0)                            # (TM, 256)

    d2 = jnp.dot(d1.astype(jnp.bfloat16), w_de2_ref[...],
                 preferred_element_type=jnp.float32) + b_de2_ref[...]
    gen_ref[...] = jax.nn.sigmoid(d2).astype(gen_ref.dtype)               # (TM, 784)


# ----------------------------------------------------------------------------
# Wrapper
# ----------------------------------------------------------------------------
def vae_dense_forward(x_nchw, eps, params, *, tm=512, gen_dtype=jnp.float32):
    """x_nchw: (N, C, H, W); eps: (N, z_dim) float32 (sampled outside for determinism)."""
    N = x_nchw.shape[0]
    C, H, W = x_nchw.shape[1:]
    D = C * H * W

    # bf16 input stream: halves the dominant HBM->VMEM input traffic; the first
    # matmul consumed bf16 anyway, so this is numerically identical.
    x_flat = x_nchw.reshape(N, D).astype(jnp.bfloat16)

    (w_en0, b_en0, w_en1, b_en1, w_lat, b_lat,
     w_de0, b_de0, w_de1, b_de1, w_de2, b_de2) = params

    z_dim = eps.shape[1]
    LAT = w_lat.shape[1]                 # lane-padded fused-head width (>= 2*z_dim)
    assert LAT >= 2 * z_dim

    # Batch tile: big enough to amortize ~0.35 us/step grid overhead, capped at
    # ceil(N/2) so the grid has >= 2 steps (both TensorCores on v7x get work;
    # deeper pipelining on v5e/v6e).  Multiple of 16 for bf16 sublane packing.
    TM = min(tm, max(16, _round_up(pl.cdiv(N, 2), 16)))
    grid = (pl.cdiv(N, TM),)             # no wrapper-side padding: ragged last
                                         # block is masked by Pallas

    tile_map = lambda i: (i, 0)          # batch-tiled arrays
    const_map = lambda i: (0, 0)         # weights/biases resident across grid steps

    weight_args = (w_en0, b_en0, w_en1, b_en1, w_lat, b_lat,
                   w_de0, b_de0, w_de1, b_de1, w_de2, b_de2)
    weight_specs = [pl.BlockSpec(w.shape, const_map) for w in weight_args]

    in_specs = [
        pl.BlockSpec((TM, D), tile_map),        # x (bf16)
        pl.BlockSpec((TM, z_dim), tile_map),    # eps (f32)
    ] + weight_specs

    out_specs = (
        pl.BlockSpec((TM, LAT), tile_map),      # packed [mu || log_var || pad]
        pl.BlockSpec((TM, D), tile_map),        # reconstruction
    )

    # Cost hint for XLA scheduling (bf16 input bytes; sigmoid ~2 transc./elem).
    w_elems = sum(int(w.shape[0]) * int(w.shape[1])
                  for w in (w_en0, w_en1, w_lat, w_de0, w_de1, w_de2))
    weight_bytes = sum(int(a.size) * a.dtype.itemsize for a in weight_args)
    act_bytes = N * (D * x_flat.dtype.itemsize
                     + z_dim * eps.dtype.itemsize
                     + LAT * 4
                     + D * jnp.dtype(gen_dtype).itemsize)
    cost = pl.CostEstimate(
        flops=2 * N * w_elems,
        transcendentals=N * (z_dim + 2 * D),
        bytes_accessed=weight_bytes + act_bytes,
    )

    meanlv, gen_flat = pl.pallas_call(
        vae_dense_kernel,
        out_shape=(
            jax.ShapeDtypeStruct((N, LAT), jnp.float32),
            jax.ShapeDtypeStruct((N, D), gen_dtype),
        ),
        grid=grid,
        in_specs=in_specs,
        out_specs=out_specs,
        compiler_params=pltpu.CompilerParams(
            dimension_semantics=("parallel",),   # shard batch across TCs on v7x
        ),
        cost_estimate=cost,
    )(x_flat, eps, *weight_args)

    mean = meanlv[:, :z_dim]
    log_var = meanlv[:, z_dim:2 * z_dim]
    gen_x = gen_flat.reshape(N, C, H, W)         # dec_reshape -> NCHW
    return mean, log_var, gen_x


# ----------------------------------------------------------------------------
# Deterministic parameter initialization (PyTorch nn.Linear-style uniform init)
# Weights stored bf16 (MXU inputs), biases f32 (added in f32).
# ----------------------------------------------------------------------------
def init_linear(key, fan_in, fan_out):
    kw, kb = jax.random.split(key)
    bound = 1.0 / jnp.sqrt(jnp.float32(fan_in))
    w = jax.random.uniform(kw, (fan_in, fan_out), jnp.float32, -bound, bound)
    b = jax.random.uniform(kb, (1, fan_out), jnp.float32, -bound, bound)
    return w, b


def init_params(key, dense_size=(784, 256, 128), z_dim=20):
    keys = jax.random.split(key, 7)
    w_en0, b_en0 = init_linear(keys[0], dense_size[0], dense_size[1])
    w_en1, b_en1 = init_linear(keys[1], dense_size[1], dense_size[2])
    w_mu, b_mu = init_linear(keys[2], dense_size[2], z_dim)
    w_lv, b_lv = init_linear(keys[3], dense_size[2], z_dim)
    w_de0, b_de0 = init_linear(keys[4], z_dim, dense_size[2])
    w_de1, b_de1 = init_linear(keys[5], dense_size[2], dense_size[1])
    w_de2, b_de2 = init_linear(keys[6], dense_size[1], dense_size[0])

    # Fuse the mu / log_var heads into one matmul, then zero-pad to a
    # lane-dense (multiple-of-128) width: unmasked output stores + full MXU
    # N tile.  The wrapper slices out the real 2*z_dim columns.
    w_lat = jnp.concatenate([w_mu, w_lv], axis=1)        # (128, 2*z)
    b_lat = jnp.concatenate([b_mu, b_lv], axis=1)        # (1, 2*z)
    lat_pad = _round_up(2 * z_dim, 128)
    w_lat = jnp.pad(w_lat, ((0, 0), (0, lat_pad - 2 * z_dim)))
    b_lat = jnp.pad(b_lat, ((0, 0), (0, lat_pad - 2 * z_dim)))

    bf16 = jnp.bfloat16
    return (w_en0.astype(bf16), b_en0,
            w_en1.astype(bf16), b_en1,
            w_lat.astype(bf16), b_lat,
            w_de0.astype(bf16), b_de0,
            w_de1.astype(bf16), b_de1,
            w_de2.astype(bf16), b_de2)


if __name__ == "__main__":
    key = jax.random.PRNGKey(0)
    k_params, k_x, k_eps = jax.random.split(key, 3)

    N, z_dim = 2, 20
    params = init_params(k_params, dense_size=(784, 256, 128), z_dim=z_dim)

    # Small deterministic example input, NCHW like the PyTorch module expects.
    x = jax.random.normal(k_x, (N, 1, 28, 28), dtype=jnp.float32)
    # torch.randn_like(var) sampled outside the kernel for determinism.
    eps = jax.random.normal(k_eps, (N, z_dim), dtype=jnp.float32)

    mean, log_var, gen_x = jax.jit(vae_dense_forward)(x, eps, params)
    jax.block_until_ready((mean, log_var, gen_x))

    assert mean.shape == (N, z_dim)
    assert log_var.shape == (N, z_dim)
    assert gen_x.shape == (N, 1, 28, 28)
    assert bool(jnp.all(jnp.isfinite(mean)))
    assert bool(jnp.all(jnp.isfinite(log_var)))
    assert bool(jnp.all((gen_x >= 0.0) & (gen_x <= 1.0)))
    print("KERNEL_OK")
</pallas_src>

<mosaic_0001>
module attributes {stable_mosaic.version = 11 : i64} {
  func.func @vae_dense_kernel(%arg0: i32, %arg1: memref<16x784xbf16, #tpu.memory_space<vmem>>, %arg2: memref<16x20xf32, #tpu.memory_space<vmem>>, %arg3: memref<784x256xbf16, #tpu.memory_space<vmem>>, %arg4: memref<1x256xf32, #tpu.memory_space<vmem>>, %arg5: memref<256x128xbf16, #tpu.memory_space<vmem>>, %arg6: memref<1x128xf32, #tpu.memory_space<vmem>>, %arg7: memref<128x128xbf16, #tpu.memory_space<vmem>>, %arg8: memref<1x128xf32, #tpu.memory_space<vmem>>, %arg9: memref<20x128xbf16, #tpu.memory_space<vmem>>, %arg10: memref<1x128xf32, #tpu.memory_space<vmem>>, %arg11: memref<128x256xbf16, #tpu.memory_space<vmem>>, %arg12: memref<1x256xf32, #tpu.memory_space<vmem>>, %arg13: memref<256x784xbf16, #tpu.memory_space<vmem>>, %arg14: memref<1x784xf32, #tpu.memory_space<vmem>>, %arg15: memref<16x128xf32, #tpu.memory_space<vmem>>, %arg16: memref<16x784xf32, #tpu.memory_space<vmem>>) attributes {dimension_semantics = [#tpu.dimension_semantics<parallel>], iteration_bounds = array<i64: 1>, scalar_prefetch = 0 : i64, scratch_operands = 0 : i64, tpu.core_type = #tpu.core_type<tc>, window_params = [{transform_indices = @transform_0, window_bounds = array<i64: 16, 784>}, {transform_indices = @transform_1, window_bounds = array<i64: 16, 20>}, {pipeline_mode = #tpu.pipeline_mode<synchronous>, transform_indices = @transform_2, window_bounds = array<i64: 784, 256>}, {pipeline_mode = #tpu.pipeline_mode<synchronous>, transform_indices = @transform_3, window_bounds = array<i64: 1, 256>}, {pipeline_mode = #tpu.pipeline_mode<synchronous>, transform_indices = @transform_4, window_bounds = array<i64: 256, 128>}, {pipeline_mode = #tpu.pipeline_mode<synchronous>, transform_indices = @transform_5, window_bounds = array<i64: 1, 128>}, {pipeline_mode = #tpu.pipeline_mode<synchronous>, transform_indices = @transform_6, window_bounds = array<i64: 128, 128>}, {pipeline_mode = #tpu.pipeline_mode<synchronous>, transform_indices = @transform_7, window_bounds = array<i64: 1, 128>}, {pipeline_mode = #tpu.pipeline_mode<synchronous>, transform_indices = @transform_8, window_bounds = array<i64: 20, 128>}, {pipeline_mode = #tpu.pipeline_mode<synchronous>, transform_indices = @transform_9, window_bounds = array<i64: 1, 128>}, {pipeline_mode = #tpu.pipeline_mode<synchronous>, transform_indices = @transform_10, window_bounds = array<i64: 128, 256>}, {pipeline_mode = #tpu.pipeline_mode<synchronous>, transform_indices = @transform_11, window_bounds = array<i64: 1, 256>}, {pipeline_mode = #tpu.pipeline_mode<synchronous>, transform_indices = @transform_12, window_bounds = array<i64: 256, 784>}, {pipeline_mode = #tpu.pipeline_mode<synchronous>, transform_indices = @transform_13, window_bounds = array<i64: 1, 784>}, {transform_indices = @transform_14, window_bounds = array<i64: 16, 128>}, {transform_indices = @transform_15, window_bounds = array<i64: 16, 784>}]} {
    %c0 = arith.constant 0 : index
    %c0_0 = arith.constant 0 : index
    %0 = vector.load %arg1[%c0, %c0_0] : memref<16x784xbf16, #tpu.memory_space<vmem>>, vector<16x784xbf16>
    %c0_1 = arith.constant 0 : index
    %c0_2 = arith.constant 0 : index
    %1 = vector.load %arg3[%c0_1, %c0_2] : memref<784x256xbf16, #tpu.memory_space<vmem>>, vector<784x256xbf16>
    %cst = arith.constant dense<0.000000e+00> : vector<16x256xf32>
    %2 = tpu.matmul %0, %1, %cst {dimension_numbers = #tpu.dot_dimension_numbers<[1], [0], [0], [1], [0, 0, 1, 1], [], []>} : vector<16x784xbf16>, vector<784x256xbf16>, vector<16x256xf32> -> vector<16x256xf32>
    %c0_3 = arith.constant 0 : index
    %c0_4 = arith.constant 0 : index
    %3 = vector.load %arg4[%c0_3, %c0_4] : memref<1x256xf32, #tpu.memory_space<vmem>>, vector<1x256xf32>
    %4 = vector.broadcast %3 : vector<1x256xf32> to vector<16x256xf32>
    %5 = arith.addf %2, %4 : vector<16x256xf32>
    %cst_5 = arith.constant 0.000000e+00 : f32
    %6 = vector.broadcast %cst_5 : f32 to vector<16x256xf32>
    %7 = arith.maximumf %5, %6 : vector<16x256xf32>
    %8 = arith.truncf %7 : vector<16x256xf32> to vector<16x256xbf16>
    %c0_6 = arith.constant 0 : index
    %c0_7 = arith.constant 0 : index
    %9 = vector.load %arg5[%c0_6, %c0_7] : memref<256x128xbf16, #tpu.memory_space<vmem>>, vector<256x128xbf16>
    %cst_8 = arith.constant dense<0.000000e+00> : vector<16x128xf32>
    %10 = tpu.matmul %8, %9, %cst_8 {dimension_numbers = #tpu.dot_dimension_numbers<[1], [0], [0], [1], [0, 0, 1, 1], [], []>} : vector<16x256xbf16>, vector<256x128xbf16>, vector<16x128xf32> -> vector<16x128xf32>
    %c0_9 = arith.constant 0 : index
    %c0_10 = arith.constant 0 : index
    %11 = vector.load %arg6[%c0_9, %c0_10] : memref<1x128xf32, #tpu.memory_space<vmem>>, vector<1x128xf32>
    %12 = vector.broadcast %11 : vector<1x128xf32> to vector<16x128xf32>
    %13 = arith.addf %10, %12 : vector<16x128xf32>
    %cst_11 = arith.constant 0.000000e+00 : f32
    %14 = vector.broadcast %cst_11 : f32 to vector<16x128xf32>
    %15 = arith.maximumf %13, %14 : vector<16x128xf32>
    %16 = arith.truncf %15 : vector<16x128xf32> to vector<16x128xbf16>
    %c0_12 = arith.constant 0 : index
    %c0_13 = arith.constant 0 : index
    %17 = vector.load %arg7[%c0_12, %c0_13] : memref<128x128xbf16, #tpu.memory_space<vmem>>, vector<128x128xbf16>
    %cst_14 = arith.constant dense<0.000000e+00> : vector<16x128xf32>
    %18 = tpu.matmul %16, %17, %cst_14 {dimension_numbers = #tpu.dot_dimension_numbers<[1], [0], [0], [1], [0, 0, 1, 1], [], []>} : vector<16x128xbf16>, vector<128x128xbf16>, vector<16x128xf32> -> vector<16x128xf32>
    %c0_15 = arith.constant 0 : index
    %c0_16 = arith.constant 0 : index
    %19 = vector.load %arg8[%c0_15, %c0_16] : memref<1x128xf32, #tpu.memory_space<vmem>>, vector<1x128xf32>
    %20 = vector.broadcast %19 : vector<1x128xf32> to vector<16x128xf32>
    %21 = arith.addf %18, %20 : vector<16x128xf32>
    %c0_17 = arith.constant 0 : index
    %c0_18 = arith.constant 0 : index
    %22 = vector.load %arg15[%c0_17, %c0_18] : memref<16x128xf32, #tpu.memory_space<vmem>>, vector<16x128xf32>
    tpu.vector_store %arg15[%c0_17, %c0_18], %21 {strides = array<i32>} : memref<16x128xf32, #tpu.memory_space<vmem>>, vector<16x128xf32>,
    %23 = vector.extract_strided_slice %21 {offsets = [0, 0], sizes = [16, 20], strides = [1, 1]} : vector<16x128xf32> to vector<16x20xf32>
    %24 = vector.extract_strided_slice %21 {offsets = [0, 20], sizes = [16, 20], strides = [1, 1]} : vector<16x128xf32> to vector<16x20xf32>
    %25 = math.exp %24 : vector<16x20xf32>
    %c0_19 = arith.constant 0 : index
    %c0_20 = arith.constant 0 : index
    %26 = vector.load %arg2[%c0_19, %c0_20] : memref<16x20xf32, #tpu.memory_space<vmem>>, vector<16x20xf32>
    %27 = arith.mulf %25, %26 : vector<16x20xf32>
    %28 = arith.addf %23, %27 : vector<16x20xf32>
    %29 = arith.truncf %28 : vector<16x20xf32> to vector<16x20xbf16>
    %c0_21 = arith.constant 0 : index
    %c0_22 = arith.constant 0 : index
    %30 = vector.load %arg9[%c0_21, %c0_22] : memref<20x128xbf16, #tpu.memory_space<vmem>>, vector<20x128xbf16>
    %cst_23 = arith.constant dense<0.000000e+00> : vector<16x128xf32>
    %31 = tpu.matmul %29, %30, %cst_23 {dimension_numbers = #tpu.dot_dimension_numbers<[1], [0], [0], [1], [0, 0, 1, 1], [], []>} : vector<16x20xbf16>, vector<20x128xbf16>, vector<16x128xf32> -> vector<16x128xf32>
    %c0_24 = arith.constant 0 : index
    %c0_25 = arith.constant 0 : index
    %32 = vector.load %arg10[%c0_24, %c0_25] : memref<1x128xf32, #tpu.memory_space<vmem>>, vector<1x128xf32>
    %33 = vector.broadcast %32 : vector<1x128xf32> to vector<16x128xf32>
    %34 = arith.addf %31, %33 : vector<16x128xf32>
    %cst_26 = arith.constant 0.000000e+00 : f32
    %35 = vector.broadcast %cst_26 : f32 to vector<16x128xf32>
    %36 = arith.maximumf %34, %35 : vector<16x128xf32>
    %37 = arith.truncf %36 : vector<16x128xf32> to vector<16x128xbf16>
    %c0_27 = arith.constant 0 : index
    %c0_28 = arith.constant 0 : index
    %38 = vector.load %arg11[%c0_27, %c0_28] : memref<128x256xbf16, #tpu.memory_space<vmem>>, vector<128x256xbf16>
    %cst_29 = arith.constant dense<0.000000e+00> : vector<16x256xf32>
    %39 = tpu.matmul %37, %38, %cst_29 {dimension_numbers = #tpu.dot_dimension_numbers<[1], [0], [0], [1], [0, 0, 1, 1], [], []>} : vector<16x128xbf16>, vector<128x256xbf16>, vector<16x256xf32> -> vector<16x256xf32>
    %c0_30 = arith.constant 0 : index
    %c0_31 = arith.constant 0 : index
    %40 = vector.load %arg12[%c0_30, %c0_31] : memref<1x256xf32, #tpu.memory_space<vmem>>, vector<1x256xf32>
    %41 = vector.broadcast %40 : vector<1x256xf32> to vector<16x256xf32>
    %42 = arith.addf %39, %41 : vector<16x256xf32>
    %cst_32 = arith.constant 0.000000e+00 : f32
    %43 = vector.broadcast %cst_32 : f32 to vector<16x256xf32>
    %44 = arith.maximumf %42, %43 : vector<16x256xf32>
    %45 = arith.truncf %44 : vector<16x256xf32> to vector<16x256xbf16>
    %c0_33 = arith.constant 0 : index
    %c0_34 = arith.constant 0 : index
    %46 = vector.load %arg13[%c0_33, %c0_34] : memref<256x784xbf16, #tpu.memory_space<vmem>>, vector<256x784xbf16>
    %cst_35 = arith.constant dense<0.000000e+00> : vector<16x784xf32>
    %47 = tpu.matmul %45, %46, %cst_35 {dimension_numbers = #tpu.dot_dimension_numbers<[1], [0], [0], [1], [0, 0, 1, 1], [], []>} : vector<16x256xbf16>, vector<256x784xbf16>, vector<16x784xf32> -> vector<16x784xf32>
    %c0_36 = arith.constant 0 : index
    %c0_37 = arith.constant 0 : index
    %48 = vector.load %arg14[%c0_36, %c0_37] : memref<1x784xf32, #tpu.memory_space<vmem>>, vector<1x784xf32>
    %49 = vector.broadcast %48 : vector<1x784xf32> to vector<16x784xf32>
    %50 = arith.addf %47, %49 : vector<16x784xf32>
    %51 = arith.negf %50 : vector<16x784xf32>
    %52 = math.exp %51 : vector<16x784xf32>
    %cst_38 = arith.constant 1.000000e+00 : f32
    %53 = vector.broadcast %cst_38 : f32 to vector<16x784xf32>
    %54 = arith.addf %53, %52 : vector<16x784xf32>
    %55 = arith.divf %53, %54 : vector<16x784xf32>
    %c0_39 = arith.constant 0 : index
    %c0_40 = arith.constant 0 : index
    %56 = vector.load %arg16[%c0_39, %c0_40] : memref<16x784xf32, #tpu.memory_space<vmem>>, vector<16x784xf32>
    tpu.vector_store %arg16[%c0_39, %c0_40], %55 {strides = array<i32>} : memref<16x784xf32, #tpu.memory_space<vmem>>, vector<16x784xf32>,
    return
  }
  func.func @transform_0(%arg0: i32) -> (i32, i32) {
    %c0_i32 = arith.constant 0 : i32
    %c0_i32_0 = arith.constant 0 : i32
    return %arg0, %c0_i32 : i32, i32
  }
  func.func @transform_1(%arg0: i32) -> (i32, i32) {
    %c0_i32 = arith.constant 0 : i32
    %c0_i32_0 = arith.constant 0 : i32
    return %arg0, %c0_i32 : i32, i32
  }
  func.func @transform_2(%arg0: i32) -> (i32, i32) {
    %c0_i32 = arith.constant 0 : i32
    %c0_i32_0 = arith.constant 0 : i32
    %c0_i32_1 = arith.constant 0 : i32
    return %c0_i32, %c0_i32_0 : i32, i32
  }
  func.func @transform_3(%arg0: i32) -> (i32, i32) {
    %c0_i32 = arith.constant 0 : i32
    %c0_i32_0 = arith.constant 0 : i32
    %c0_i32_1 = arith.constant 0 : i32
    return %c0_i32, %c0_i32_0 : i32, i32
  }
  func.func @transform_4(%arg0: i32) -> (i32, i32) {
    %c0_i32 = arith.constant 0 : i32
    %c0_i32_0 = arith.constant 0 : i32
    %c0_i32_1 = arith.constant 0 : i32
    return %c0_i32, %c0_i32_0 : i32, i32
  }
  func.func @transform_5(%arg0: i32) -> (i32, i32) {
    %c0_i32 = arith.constant 0 : i32
    %c0_i32_0 = arith.constant 0 : i32
    %c0_i32_1 = arith.constant 0 : i32
    return %c0_i32, %c0_i32_0 : i32, i32
  }
  func.func @transform_6(%arg0: i32) -> (i32, i32) {
    %c0_i32 = arith.constant 0 : i32
    %c0_i32_0 = arith.constant 0 : i32
    %c0_i32_1 = arith.constant 0 : i32
    return %c0_i32, %c0_i32_0 : i32, i32
  }
  func.func @transform_7(%arg0: i32) -> (i32, i32) {
    %c0_i32 = arith.constant 0 : i32
    %c0_i32_0 = arith.constant 0 : i32
    %c0_i32_1 = arith.constant 0 : i32
    return %c0_i32, %c0_i32_0 : i32, i32
  }
  func.func @transform_8(%arg0: i32) -> (i32, i32) {
    %c0_i32 = arith.constant 0 : i32
    %c0_i32_0 = arith.constant 0 : i32
    %c0_i32_1 = arith.constant 0 : i32
    return %c0_i32, %c0_i32_0 : i32, i32
  }
  func.func @transform_9(%arg0: i32) -> (i32, i32) {
    %c0_i32 = arith.constant 0 : i32
    %c0_i32_0 = arith.constant 0 : i32
    %c0_i32_1 = arith.constant 0 : i32
    return %c0_i32, %c0_i32_0 : i32, i32
  }
  func.func @transform_10(%arg0: i32) -> (i32, i32) {
    %c0_i32 = arith.constant 0 : i32
    %c0_i32_0 = arith.constant 0 : i32
    %c0_i32_1 = arith.constant 0 : i32
    return %c0_i32, %c0_i32_0 : i32, i32
  }
  func.func @transform_11(%arg0: i32) -> (i32, i32) {
    %c0_i32 = arith.constant 0 : i32
    %c0_i32_0 = arith.constant 0 : i32
    %c0_i32_1 = arith.constant 0 : i32
    return %c0_i32, %c0_i32_0 : i32, i32
  }
  func.func @transform_12(%arg0: i32) -> (i32, i32) {
    %c0_i32 = arith.constant 0 : i32
    %c0_i32_0 = arith.constant 0 : i32
    %c0_i32_1 = arith.constant 0 : i32
    return %c0_i32, %c0_i32_0 : i32, i32
  }
  func.func @transform_13(%arg0: i32) -> (i32, i32) {
    %c0_i32 = arith.constant 0 : i32
    %c0_i32_0 = arith.constant 0 : i32
    %c0_i32_1 = arith.constant 0 : i32
    return %c0_i32, %c0_i32_0 : i32, i32
  }
  func.func @transform_14(%arg0: i32) -> (i32, i32) {
    %c0_i32 = arith.constant 0 : i32
    %c0_i32_0 = arith.constant 0 : i32
    return %arg0, %c0_i32 : i32, i32
  }
  func.func @transform_15(%arg0: i32) -> (i32, i32) {
    %c0_i32 = arith.constant 0 : i32
    %c0_i32_0 = arith.constant 0 : i32
    return %arg0, %c0_i32 : i32, i32
  }
}

</mosaic_0001>

<llo_original>
// kernel: vae_dense_forward.1
$region0: #{vae_dense_forward.1}
  #allocation0 [shape = 'u32[]', space=smem, size = 0x4, offset = 0x4, fixed_abs, tag = 'smem constant byte address 0x4 - core index']
  #allocation1 [shape = 'u32[144,128]{1,0:T(1,128)}', space=vmem, size = 0x12000, scoped, tag = 'internal scratch']
  %s0 = inlined_call_operand.vmem [shape: bf16[2,784], index: 0, kind: input, shape index: {}]
  %s1 = inlined_call_operand.vmem [shape: f32[2,20], index: 1, kind: input, shape index: {}]
  %s2 = inlined_call_operand.vmem [shape: bf16[784,256], index: 2, kind: input, shape index: {}]
  %s3 = inlined_call_operand.vmem [shape: f32[1,256], index: 3, kind: input, shape index: {}]
  %s4 = inlined_call_operand.vmem [shape: bf16[256,128], index: 4, kind: input, shape index: {}]
  %s5 = inlined_call_operand.vmem [shape: f32[1,128], index: 5, kind: input, shape index: {}]
  %s6 = inlined_call_operand.vmem [shape: bf16[128,128], index: 6, kind: input, shape index: {}]
  %s7 = inlined_call_operand.vmem [shape: f32[1,128], index: 7, kind: input, shape index: {}]
  %s8 = inlined_call_operand.vmem [shape: bf16[20,128], index: 8, kind: input, shape index: {}]
  %s9 = inlined_call_operand.vmem [shape: f32[1,128], index: 9, kind: input, shape index: {}]
  %s10 = inlined_call_operand.vmem [shape: bf16[128,256], index: 10, kind: input, shape index: {}]
  %s11 = inlined_call_operand.vmem [shape: f32[1,256], index: 11, kind: input, shape index: {}]
  %s12 = inlined_call_operand.vmem [shape: bf16[256,784], index: 12, kind: input, shape index: {}]
  %s13 = inlined_call_operand.vmem [shape: f32[1,784], index: 13, kind: input, shape index: {}]
  %s14 = inlined_call_operand.vmem [shape: f32[2,128], index: 14, kind: output, shape index: {0}]
  %s15 = inlined_call_operand.vmem [shape: f32[2,784], index: 15, kind: output, shape index: {1}]
  %16 = xla_tuple %s14, %s15
  %s17 = sld [smem:[#allocation0]]
  $region126: #{vae_dense_forward.1} parent=0
    _
  %s19 = ssub.s32 1, %s17
  %s20 = scalar_select 0, %s19, %s17
  $region1: #{vae_dense_forward.1} parent=0
    #allocation2 [shape = 'u8[8192]{0}', space=vmem, size = 0x2000, scoped, tag = 'output window, operand 0, single buffered']
    #allocation3 [shape = 'u8[57344]{0}', space=vmem, size = 0xe000, scoped, tag = 'output window, operand 1, single buffered']
    // Predicated region
    $region2: #{vae_dense_forward.1} parent=1 // pred_check
      _
    $region3: #{vae_dense_forward.1} parent=1 // pred_check_branch
      %22 = sbr.rel (0) target = $region5
    $region4: #{vae_dense_forward.1} parent=1 // pred_region
      _
    $region5: #{vae_dense_forward.1} parent=1 // pred_fallthru
      _
    // Predicated region
    $region6: #{vae_dense_forward.1} parent=1 // pred_check
      _
    $region7: #{vae_dense_forward.1} parent=1 // pred_check_branch
      %24 = sbr.rel (0) target = $region9
    $region8: #{vae_dense_forward.1} parent=1 // pred_region
      _
    $region9: #{vae_dense_forward.1} parent=1 // pred_fallthru
      _
    // Predicated region
    $region10: #{vae_dense_forward.1} parent=1 // pred_check
      _
    $region11: #{vae_dense_forward.1} parent=1 // pred_check_branch
      %26 = sbr.rel (0) target = $region13
    $region12: #{vae_dense_forward.1} parent=1 // pred_region
      _
    $region13: #{vae_dense_forward.1} parent=1 // pred_fallthru
      _
    // Predicated region
    $region14: #{vae_dense_forward.1} parent=1 // pred_check
      _
    $region15: #{vae_dense_forward.1} parent=1 // pred_check_branch
      %28 = sbr.rel (0) target = $region17
    $region16: #{vae_dense_forward.1} parent=1 // pred_region
      _
    $region17: #{vae_dense_forward.1} parent=1 // pred_fallthru
      _
    // Predicated region
    $region18: #{vae_dense_forward.1} parent=1 // pred_check
      _
    $region19: #{vae_dense_forward.1} parent=1 // pred_check_branch
      %30 = sbr.rel (0) target = $region21
    $region20: #{vae_dense_forward.1} parent=1 // pred_region
      _
    $region21: #{vae_dense_forward.1} parent=1 // pred_fallthru
      _
    // Predicated region
    $region22: #{vae_dense_forward.1} parent=1 // pred_check
      _
    $region23: #{vae_dense_forward.1} parent=1 // pred_check_branch
      %32 = sbr.rel (0) target = $region25
    $region24: #{vae_dense_forward.1} parent=1 // pred_region
      _
    $region25: #{vae_dense_forward.1} parent=1 // pred_fallthru
      _
    // Predicated region
    $region26: #{vae_dense_forward.1} parent=1 // pred_check
      _
    $region27: #{vae_dense_forward.1} parent=1 // pred_check_branch
      %34 = sbr.rel (0) target = $region29
    $region28: #{vae_dense_forward.1} parent=1 // pred_region
      _
    $region29: #{vae_dense_forward.1} parent=1 // pred_fallthru
      _
    // Predicated region
    $region30: #{vae_dense_forward.1} parent=1 // pred_check
      _
    $region31: #{vae_dense_forward.1} parent=1 // pred_check_branch
      %36 = sbr.rel (0) target = $region33
    $region32: #{vae_dense_forward.1} parent=1 // pred_region
      _
    $region33: #{vae_dense_forward.1} parent=1 // pred_fallthru
      _
    // Predicated region
    $region34: #{vae_dense_forward.1} parent=1 // pred_check
      _
    $region35: #{vae_dense_forward.1} parent=1 // pred_check_branch
      %38 = sbr.rel (0) target = $region37
    $region36: #{vae_dense_forward.1} parent=1 // pred_region
      _
    $region37: #{vae_dense_forward.1} parent=1 // pred_fallthru
      _
    // Predicated region
    $region38: #{vae_dense_forward.1} parent=1 // pred_check
      _
    $region39: #{vae_dense_forward.1} parent=1 // pred_check_branch
      %40 = sbr.rel (0) target = $region41
    $region40: #{vae_dense_forward.1} parent=1 // pred_region
      _
    $region41: #{vae_dense_forward.1} parent=1 // pred_fallthru
      _
    // Predicated region
    $region42: #{vae_dense_forward.1} parent=1 // pred_check
      _
    $region43: #{vae_dense_forward.1} parent=1 // pred_check_branch
      %42 = sbr.rel (0) target = $region45
    $region44: #{vae_dense_forward.1} parent=1 // pred_region
      _
    $region45: #{vae_dense_forward.1} parent=1 // pred_fallthru
      _
    // Predicated region
    $region46: #{vae_dense_forward.1} parent=1 // pred_check
      _
    $region47: #{vae_dense_forward.1} parent=1 // pred_check_branch
      %44 = sbr.rel (0) target = $region49
    $region48: #{vae_dense_forward.1} parent=1 // pred_region
      _
    $region49: #{vae_dense_forward.1} parent=1 // pred_fallthru
      _
    // Predicated region
    $region50: #{vae_dense_forward.1} parent=1 // pred_check
      _
    $region51: #{vae_dense_forward.1} parent=1 // pred_check_branch
      %46 = sbr.rel (0) target = $region53
    $region52: #{vae_dense_forward.1} parent=1 // pred_region
      _
    $region53: #{vae_dense_forward.1} parent=1 // pred_fallthru
      _
    // Predicated region
    $region54: #{vae_dense_forward.1} parent=1 // pred_check
      _
    $region55: #{vae_dense_forward.1} parent=1 // pred_check_branch
      %48 = sbr.rel (0) target = $region57
    $region56: #{vae_dense_forward.1} parent=1 // pred_region
      _
    $region57: #{vae_dense_forward.1} parent=1 // pred_fallthru
      _
    %v50 = vld [vmem:[%s0] sm:$0x7f]
    %v51 = vld [vmem:[%s0 + $0x7] sm:$0x7f]
    %v52 = vld [vmem:[%s0 + $0xe] sm:$0x7f]
    %v53 = vld [vmem:[%s0 + $0x15] sm:$0x7f]
    %v54 = vld [vmem:[%s0 + $0x1c] sm:$0x7f]
    %v55 = vld [vmem:[%s0 + $0x23] sm:$0x7f]
    %v56 = vld [vmem:[%s0 + $0x2a] sm:$0x7f]
    %v57 = vld [vmem:[%s0 + $0x31] sm:$0x7f]
    %v58 = vld [vmem:[%s2] sm:$0xff]
    %v59 = vld [vmem:[%s2 + $0x8] sm:$0xff]
    %v60 = vld [vmem:[%s2 + $0x10] sm:$0xff]
    %v61 = vld [vmem:[%s2 + $0x18] sm:$0xff]
    %v62 = vld [vmem:[%s2 + $0x20] sm:$0xff]
    %v63 = vld [vmem:[%s2 + $0x28] sm:$0xff]
    %v64 = vld [vmem:[%s2 + $0x30] sm:$0xff]
    %v65 = vld [vmem:[%s2 + $0x38] sm:$0xff]
    %v66 = vld [vmem:[%s2 + $0x40] sm:$0xff]
    %v67 = vld [vmem:[%s2 + $0x48] sm:$0xff]
    %v68 = vld [vmem:[%s2 + $0x50] sm:$0xff]
    %v69 = vld [vmem:[%s2 + $0x58] sm:$0xff]
    %v70 = vld [vmem:[%s2 + $0x60] sm:$0xff]
    %v71 = vld [vmem:[%s2 + $0x68] sm:$0xff]
    %v72 = vld [vmem:[%s2 + $0x70] sm:$0xff]
    %v73 = vld [vmem:[%s2 + $0x78] sm:$0xff]
    %v74 = vld [vmem:[%s2 + $0x80] sm:$0xff]
    %v75 = vld [vmem:[%s2 + $0x88] sm:$0xff]
    %v76 = vld [vmem:[%s2 + $0x90] sm:$0xff]
    %v77 = vld [vmem:[%s2 + $0x98] sm:$0xff]
    %v78 = vld [vmem:[%s2 + $0xa0] sm:$0xff]
    %v79 = vld [vmem:[%s2 + $0xa8] sm:$0xff]
    %v80 = vld [vmem:[%s2 + $0xb0] sm:$0xff]
    %v81 = vld [vmem:[%s2 + $0xb8] sm:$0xff]
    %v82 = vld [vmem:[%s2 + $0xc0] sm:$0xff]
    %v83 = vld [vmem:[%s2 + $0xc8] sm:$0xff]
    %v84 = vld [vmem:[%s2 + $0xd0] sm:$0xff]
    %v85 = vld [vmem:[%s2 + $0xd8] sm:$0xff]
    %v86 = vld [vmem:[%s2 + $0xe0] sm:$0xff]
    %v87 = vld [vmem:[%s2 + $0xe8] sm:$0xff]
    %v88 = vld [vmem:[%s2 + $0xf0] sm:$0xff]
    %v89 = vld [vmem:[%s2 + $0xf8] sm:$0xff]
    %v90 = vld [vmem:[%s2 + $0x100] sm:$0xff]
    %v91 = vld [vmem:[%s2 + $0x108] sm:$0xff]
    %v92 = vld [vmem:[%s2 + $0x110] sm:$0xff]
    %v93 = vld [vmem:[%s2 + $0x118] sm:$0xff]
    %v94 = vld [vmem:[%s2 + $0x120] sm:$0xff]
    %v95 = vld [vmem:[%s2 + $0x128] sm:$0xff]
    %v96 = vld [vmem:[%s2 + $0x130] sm:$0xff]
    %v97 = vld [vmem:[%s2 + $0x138] sm:$0xff]
    %v98 = vld [vmem:[%s2 + $0x140] sm:$0xff]
    %v99 = vld [vmem:[%s2 + $0x148] sm:$0xff]
    %v100 = vld [vmem:[%s2 + $0x150] sm:$0xff]
    %v101 = vld [vmem:[%s2 + $0x158] sm:$0xff]
    %v102 = vld [vmem:[%s2 + $0x160] sm:$0xff]
    %v103 = vld [vmem:[%s2 + $0x168] sm:$0xff]
    %v104 = vld [vmem:[%s2 + $0x170] sm:$0xff]
    %v105 = vld [vmem:[%s2 + $0x178] sm:$0xff]
    %v106 = vld [vmem:[%s2 + $0x180] sm:$0xff]
    %v107 = vld [vmem:[%s2 + $0x188] sm:$0xff]
    %v108 = vld [vmem:[%s2 + $0x190] sm:$0xff]
    %v109 = vld [vmem:[%s2 + $0x198] sm:$0xff]
    %v110 = vld [vmem:[%s2 + $0x1a0] sm:$0xff]
    %v111 = vld [vmem:[%s2 + $0x1a8] sm:$0xff]
    %v112 = vld [vmem:[%s2 + $0x1b0] sm:$0xff]
    %v113 = vld [vmem:[%s2 + $0x1b8] sm:$0xff]
    %v114 = vld [vmem:[%s2 + $0x1c0] sm:$0xff]
    %v115 = vld [vmem:[%s2 + $0x1c8] sm:$0xff]
    %v116 = vld [vmem:[%s2 + $0x1d0] sm:$0xff]
    %v117 = vld [vmem:[%s2 + $0x1d8] sm:$0xff]
    %v118 = vld [vmem:[%s2 + $0x1e0] sm:$0xff]
    %v119 = vld [vmem:[%s2 + $0x1e8] sm:$0xff]
    %v120 = vld [vmem:[%s2 + $0x1f0] sm:$0xff]
    %v121 = vld [vmem:[%s2 + $0x1f8] sm:$0xff]
    %v122 = vld [vmem:[%s2 + $0x200] sm:$0xff]
    %v123 = vld [vmem:[%s2 + $0x208] sm:$0xff]
    %v124 = vld [vmem:[%s2 + $0x210] sm:$0xff]
    %v125 = vld [vmem:[%s2 + $0x218] sm:$0xff]
    %v126 = vld [vmem:[%s2 + $0x220] sm:$0xff]
    %v127 = vld [vmem:[%s2 + $0x228] sm:$0xff]
    %v128 = vld [vmem:[%s2 + $0x230] sm:$0xff]
    %v129 = vld [vmem:[%s2 + $0x238] sm:$0xff]
    %v130 = vld [vmem:[%s2 + $0x240] sm:$0xff]
    %v131 = vld [vmem:[%s2 + $0x248] sm:$0xff]
    %v132 = vld [vmem:[%s2 + $0x250] sm:$0xff]
    %v133 = vld [vmem:[%s2 + $0x258] sm:$0xff]
    %v134 = vld [vmem:[%s2 + $0x260] sm:$0xff]
    %v135 = vld [vmem:[%s2 + $0x268] sm:$0xff]
    %v136 = vld [vmem:[%s2 + $0x270] sm:$0xff]
    %v137 = vld [vmem:[%s2 + $0x278] sm:$0xff]
    %v138 = vld [vmem:[%s2 + $0x280] sm:$0xff]
    %v139 = vld [vmem:[%s2 + $0x288] sm:$0xff]
    %v140 = vld [vmem:[%s2 + $0x290] sm:$0xff]
    %v141 = vld [vmem:[%s2 + $0x298] sm:$0xff]
    %v142 = vld [vmem:[%s2 + $0x2a0] sm:$0xff]
    %v143 = vld [vmem:[%s2 + $0x2a8] sm:$0xff]
    %v144 = vld [vmem:[%s2 + $0x2b0] sm:$0xff]
    %v145 = vld [vmem:[%s2 + $0x2b8] sm:$0xff]
    %v146 = vld [vmem:[%s2 + $0x2c0] sm:$0xff]
    %v147 = vld [vmem:[%s2 + $0x2c8] sm:$0xff]
    %v148 = vld [vmem:[%s2 + $0x2d0] sm:$0xff]
    %v149 = vld [vmem:[%s2 + $0x2d8] sm:$0xff]
    %v150 = vld [vmem:[%s2 + $0x2e0] sm:$0xff]
    %v151 = vld [vmem:[%s2 + $0x2e8] sm:$0xff]
    %v152 = vld [vmem:[%s2 + $0x2f0] sm:$0xff]
    %v153 = vld [vmem:[%s2 + $0x2f8] sm:$0xff]
    %v154 = vld [vmem:[%s2 + $0x300] sm:$0xff]
    %v155 = vld [vmem:[%s2 + $0x308] sm:$0xff]
    %v156 = vld [vmem:[%s3] sm:$0x3]
    %v158 = vlaneseq
    %v159 = vshrl.u32 %v158, 7
    %v160 = vsub.s32 0, %v159
    %v161 = vrot.slane %v156, %v160
    %v162 = vlaneseq
    %v163 = vshrl.u32 %v162, 7
    %v164 = vsub.s32 1, %v163
    %v165 = vrot.slane %v156, %v164
    %v176 = vcombine.low %v50, %v51
    %v177 = vcombine.high %v50, %v51
    %v178 = vcombine.low %v52, %v53
    %v179 = vcombine.high %v52, %v53
    %v180 = vcombine.low %v54, %v55
    %v181 = vcombine.high %v54, %v55
    %v182 = vcombine.low %v56, %v57
    %v183 = vcombine.high %v56, %v57
    %v185 = vunpack.c.l.s4 1966171168
    %v186 = vunpack.c.0.s8 %v185
    %v187 = vlaneseq
    %v188 = vshrl.u32 %v187, 7
    %v189 = vsub.s32 %v186, %v188
    %v190 = vrot.slane %v176, %v189
    %v192 = vunpack.c.l.s4 1966171168
    %v193 = vunpack.c.0.s8 %v192
    %v194 = vlaneseq
    %v195 = vshrl.u32 %v194, 7
    %v196 = vsub.s32 %v193, %v195
    %v197 = vrot.slane %v177, %v196
    %v199 = vunpack.c.l.s4 1966171168
    %v200 = vunpack.c.0.s8 %v199
    %v201 = vlaneseq
    %v202 = vshrl.u32 %v201, 7
    %v203 = vsub.s32 %v200, %v202
    %v204 = vrot.slane %v178, %v203
    %v206 = vunpack.c.l.s4 1966171168
    %v207 = vunpack.c.0.s8 %v206
    %v208 = vlaneseq
    %v209 = vshrl.u32 %v208, 7
    %v210 = vsub.s32 %v207, %v209
    %v211 = vrot.slane %v179, %v210
    %v213 = vunpack.c.l.s4 1966171168
    %v214 = vunpack.c.0.s8 %v213
    %v215 = vlaneseq
    %v216 = vshrl.u32 %v215, 7
    %v217 = vsub.s32 %v214, %v216
    %v218 = vrot.slane %v180, %v217
    %v220 = vunpack.c.l.s4 1966171168
    %v221 = vunpack.c.0.s8 %v220
    %v222 = vlaneseq
    %v223 = vshrl.u32 %v222, 7
    %v224 = vsub.s32 %v221, %v223
    %v225 = vrot.slane %v181, %v224
    %v227 = vunpack.c.l.s4 1966171168
    %v228 = vunpack.c.0.s8 %v227
    %v229 = vlaneseq
    %v230 = vshrl.u32 %v229, 7
    %v231 = vsub.s32 %v228, %v230
    %v232 = vrot.slane %v182, %v231
    %v234 = vunpack.c.l.s4 1966171168
    %v235 = vunpack.c.0.s8 %v234
    %v236 = vlaneseq
    %v237 = vshrl.u32 %v236, 7
    %v238 = vsub.s32 %v235, %v237
    %v239 = vrot.slane %v183, %v238
    %v240 = vcombine.low %v190, %v204
    %v241 = vcombine.high %v190, %v204
    %v242 = vcombine.low %v197, %v211
    %v243 = vcombine.high %v197, %v211
    %v244 = vcombine.low %v218, %v232
    %v245 = vcombine.high %v218, %v232
    %v246 = vcombine.low %v225, %v239
    %v247 = vcombine.high %v225, %v239
    %v249 = vunpack.c.l.s4 1966171168
    %v250 = vunpack.c.0.s8 %v249
    %v251 = vlaneseq
    %v252 = vshrl.u32 %v251, 7
    %v253 = vsub.s32 %v250, %v252
    %v254 = vrot.slane %v240, %v253
    %v256 = vunpack.c.l.s4 1966171168
    %v257 = vunpack.c.0.s8 %v256
    %v258 = vlaneseq
    %v259 = vshrl.u32 %v258, 7
    %v260 = vsub.s32 %v257, %v259
    %v261 = vrot.slane %v242, %v260
    %v263 = vunpack.c.l.s4 1966171168
    %v264 = vunpack.c.0.s8 %v263
    %v265 = vlaneseq
    %v266 = vshrl.u32 %v265, 7
    %v267 = vsub.s32 %v264, %v266
    %v268 = vrot.slane %v241, %v267
    %v270 = vunpack.c.l.s4 1966171168
    %v271 = vunpack.c.0.s8 %v270
    %v272 = vlaneseq
    %v273 = vshrl.u32 %v272, 7
    %v274 = vsub.s32 %v271, %v273
    %v275 = vrot.slane %v243, %v274
    %v277 = vunpack.c.l.s4 1966171168
    %v278 = vunpack.c.0.s8 %v277
    %v279 = vlaneseq
    %v280 = vshrl.u32 %v279, 7
    %v281 = vsub.s32 %v278, %v280
    %v282 = vrot.slane %v244, %v281
    %v284 = vunpack.c.l.s4 1966171168
    %v285 = vunpack.c.0.s8 %v284
    %v286 = vlaneseq
    %v287 = vshrl.u32 %v286, 7
    %v288 = vsub.s32 %v285, %v287
    %v289 = vrot.slane %v246, %v288
    %v291 = vunpack.c.l.s4 1966171168
    %v292 = vunpack.c.0.s8 %v291
    %v293 = vlaneseq
    %v294 = vshrl.u32 %v293, 7
    %v295 = vsub.s32 %v292, %v294
    %v296 = vrot.slane %v245, %v295
    %v298 = vunpack.c.l.s4 1966171168
    %v299 = vunpack.c.0.s8 %v298
    %v300 = vlaneseq
    %v301 = vshrl.u32 %v300, 7
    %v302 = vsub.s32 %v299, %v301
    %v303 = vrot.slane %v247, %v302
    %v304 = vcombine.low %v254, %v282
    %v305 = vcombine.high %v254, %v282
    %v306 = vcombine.low %v261, %v289
    %v307 = vcombine.high %v261, %v289
    %v308 = vcombine.low %v268, %v296
    %v309 = vcombine.high %v268, %v296
    %v310 = vcombine.low %v275, %v303
    %v415 = vunpack.c.l.b16 %v58
    %v416 = vunpack.c.h.b16 %v58
    %v417 = vunpack.c.l.b16 %v59
    %v418 = vunpack.c.h.b16 %v59
    %v419 = vunpack.c.l.b16 %v60
    %v420 = vunpack.c.h.b16 %v60
    %v421 = vunpack.c.l.b16 %v61
    %v422 = vunpack.c.h.b16 %v61
    %v423 = vunpack.c.l.b16 %v62
    %v424 = vunpack.c.h.b16 %v62
    %v425 = vunpack.c.l.b16 %v63
    %v426 = vunpack.c.h.b16 %v63
    %v427 = vunpack.c.l.b16 %v64
    %v428 = vunpack.c.h.b16 %v64
    %v429 = vunpack.c.l.b16 %v65
    %v430 = vunpack.c.h.b16 %v65
    %v431 = vunpack.c.l.b16 %v66
    %v432 = vunpack.c.h.b16 %v66
    %v433 = vunpack.c.l.b16 %v67
    %v434 = vunpack.c.h.b16 %v67
    %v435 = vunpack.c.l.b16 %v68
    %v436 = vunpack.c.h.b16 %v68
    %v437 = vunpack.c.l.b16 %v69
    %v438 = vunpack.c.h.b16 %v69
    %v439 = vunpack.c.l.b16 %v70
    %v440 = vunpack.c.h.b16 %v70
    %v441 = vunpack.c.l.b16 %v71
    %v442 = vunpack.c.h.b16 %v71
    %v443 = vunpack.c.l.b16 %v72
    %v444 = vunpack.c.h.b16 %v72
    %v445 = vunpack.c.l.b16 %v73
    %v446 = vunpack.c.h.b16 %v73
    %v447 = vunpack.c.l.b16 %v74
    %v448 = vunpack.c.h.b16 %v74
    %v449 = vunpack.c.l.b16 %v75
    %v450 = vunpack.c.h.b16 %v75
    %v451 = vunpack.c.l.b16 %v76
    %v452 = vunpack.c.h.b16 %v76
    %v453 = vunpack.c.l.b16 %v77
    %v454 = vunpack.c.h.b16 %v77
    %v455 = vunpack.c.l.b16 %v78
    %v456 = vunpack.c.h.b16 %v78
    %v457 = vunpack.c.l.b16 %v79
    %v458 = vunpack.c.h.b16 %v79
    %v459 = vunpack.c.l.b16 %v80
    %v460 = vunpack.c.h.b16 %v80
    %v461 = vunpack.c.l.b16 %v81
    %v462 = vunpack.c.h.b16 %v81
    %v463 = vunpack.c.l.b16 %v82
    %v464 = vunpack.c.h.b16 %v82
    %v465 = vunpack.c.l.b16 %v83
    %v466 = vunpack.c.h.b16 %v83
    %v467 = vunpack.c.l.b16 %v84
    %v468 = vunpack.c.h.b16 %v84
    %v469 = vunpack.c.l.b16 %v85
    %v470 = vunpack.c.h.b16 %v85
    %v471 = vunpack.c.l.b16 %v86
    %v472 = vunpack.c.h.b16 %v86
    %v473 = vunpack.c.l.b16 %v87
    %v474 = vunpack.c.h.b16 %v87
    %v475 = vunpack.c.l.b16 %v88
    %v476 = vunpack.c.h.b16 %v88
    %v477 = vunpack.c.l.b16 %v89
    %v478 = vunpack.c.h.b16 %v89
    %v479 = vunpack.c.l.b16 %v90
    %v480 = vunpack.c.h.b16 %v90
    %v481 = vunpack.c.l.b16 %v91
    %v482 = vunpack.c.h.b16 %v91
    %v483 = vunpack.c.l.b16 %v92
    %v484 = vunpack.c.h.b16 %v92
    %v485 = vunpack.c.l.b16 %v93
    %v486 = vunpack.c.h.b16 %v93
    %v487 = vunpack.c.l.b16 %v94
    %v488 = vunpack.c.h.b16 %v94
    %v489 = vunpack.c.l.b16 %v95
    %v490 = vunpack.c.h.b16 %v95
    %v491 = vunpack.c.l.b16 %v96
    %v492 = vunpack.c.h.b16 %v96
    %v493 = vunpack.c.l.b16 %v97
    %v494 = vunpack.c.h.b16 %v97
    %v495 = vunpack.c.l.b16 %v98
    %v496 = vunpack.c.h.b16 %v98
    %v497 = vunpack.c.l.b16 %v99
    %v498 = vunpack.c.h.b16 %v99
    %v499 = vunpack.c.l.b16 %v100
    %v500 = vunpack.c.h.b16 %v100
    %v501 = vunpack.c.l.b16 %v101
    %v502 = vunpack.c.h.b16 %v101
    %v503 = vunpack.c.l.b16 %v102
    %v504 = vunpack.c.h.b16 %v102
    %v505 = vunpack.c.l.b16 %v103
    %v506 = vunpack.c.h.b16 %v103
    %v507 = vunpack.c.l.b16 %v104
    %v508 = vunpack.c.h.b16 %v104
    %v509 = vunpack.c.l.b16 %v105
    %v510 = vunpack.c.h.b16 %v105
    %v511 = vunpack.c.l.b16 %v106
    %v512 = vunpack.c.h.b16 %v106
    %v513 = vunpack.c.l.b16 %v107
    %v514 = vunpack.c.h.b16 %v107
    %v515 = vunpack.c.l.b16 %v108
    %v516 = vunpack.c.h.b16 %v108
    %v517 = vunpack.c.l.b16 %v109
    %v518 = vunpack.c.h.b16 %v109
    %v519 = vunpack.c.l.b16 %v110
    %v520 = vunpack.c.h.b16 %v110
    %v521 = vunpack.c.l.b16 %v111
    %v522 = vunpack.c.h.b16 %v111
    %v523 = vunpack.c.l.b16 %v112
    %v524 = vunpack.c.h.b16 %v112
    %v525 = vunpack.c.l.b16 %v113
    %v526 = vunpack.c.h.b16 %v113
    %v527 = vunpack.c.l.b16 %v114
    %v528 = vunpack.c.h.b16 %v114
    %v529 = vunpack.c.l.b16 %v115
    %v530 = vunpack.c.h.b16 %v115
    %v531 = vunpack.c.l.b16 %v116
    %v532 = vunpack.c.h.b16 %v116
    %v533 = vunpack.c.l.b16 %v117
    %v534 = vunpack.c.h.b16 %v117
    %v535 = vunpack.c.l.b16 %v118
    %v536 = vunpack.c.h.b16 %v118
    %v537 = vunpack.c.l.b16 %v119
    %v538 = vunpack.c.h.b16 %v119
    %v539 = vunpack.c.l.b16 %v120
    %v540 = vunpack.c.h.b16 %v120
    %v541 = vunpack.c.l.b16 %v121
    %v542 = vunpack.c.h.b16 %v121
    %v543 = vunpack.c.l.b16 %v122
    %v544 = vunpack.c.h.b16 %v122
    %v545 = vunpack.c.l.b16 %v123
    %v546 = vunpack.c.h.b16 %v123
    %v547 = vunpack.c.l.b16 %v124
    %v548 = vunpack.c.h.b16 %v124
    %v549 = vunpack.c.l.b16 %v125
    %v550 = vunpack.c.h.b16 %v125
    %v551 = vunpack.c.l.b16 %v126
    %v552 = vunpack.c.h.b16 %v126
    %v553 = vunpack.c.l.b16 %v127
    %v554 = vunpack.c.h.b16 %v127
    %v555 = vunpack.c.l.b16 %v128
    %v556 = vunpack.c.h.b16 %v128
    %v557 = vunpack.c.l.b16 %v129
    %v558 = vunpack.c.h.b16 %v129
    %v559 = vunpack.c.l.b16 %v130
    %v560 = vunpack.c.h.b16 %v130
    %v561 = vunpack.c.l.b16 %v131
    %v562 = vunpack.c.h.b16 %v131
    %v563 = vunpack.c.l.b16 %v132
    %v564 = vunpack.c.h.b16 %v132
    %v565 = vunpack.c.l.b16 %v133
    %v566 = vunpack.c.h.b16 %v133
    %v567 = vunpack.c.l.b16 %v134
    %v568 = vunpack.c.h.b16 %v134
    %v569 = vunpack.c.l.b16 %v135
    %v570 = vunpack.c.h.b16 %v135
    %v571 = vunpack.c.l.b16 %v136
    %v572 = vunpack.c.h.b16 %v136
    %v573 = vunpack.c.l.b16 %v137
    %v574 = vunpack.c.h.b16 %v137
    %v575 = vunpack.c.l.b16 %v138
    %v576 = vunpack.c.h.b16 %v138
    %v577 = vunpack.c.l.b16 %v139
    %v578 = vunpack.c.h.b16 %v139
    %v579 = vunpack.c.l.b16 %v140
    %v580 = vunpack.c.h.b16 %v140
    %v581 = vunpack.c.l.b16 %v141
    %v582 = vunpack.c.h.b16 %v141
    %v583 = vunpack.c.l.b16 %v142
    %v584 = vunpack.c.h.b16 %v142
    %v585 = vunpack.c.l.b16 %v143
    %v586 = vunpack.c.h.b16 %v143
    %v587 = vunpack.c.l.b16 %v144
    %v588 = vunpack.c.h.b16 %v144
    %v589 = vunpack.c.l.b16 %v145
    %v590 = vunpack.c.h.b16 %v145
    %v591 = vunpack.c.l.b16 %v146
    %v592 = vunpack.c.h.b16 %v146
    %v593 = vunpack.c.l.b16 %v147
    %v594 = vunpack.c.h.b16 %v147
    %v595 = vunpack.c.l.b16 %v148
    %v596 = vunpack.c.h.b16 %v148
    %v597 = vunpack.c.l.b16 %v149
    %v598 = vunpack.c.h.b16 %v149
    %v599 = vunpack.c.l.b16 %v150
    %v600 = vunpack.c.h.b16 %v150
    %v601 = vunpack.c.l.b16 %v151
    %v602 = vunpack.c.h.b16 %v151
    %v603 = vunpack.c.l.b16 %v152
    %v604 = vunpack.c.h.b16 %v152
    %v605 = vunpack.c.l.b16 %v153
    %v606 = vunpack.c.h.b16 %v153
    %v607 = vunpack.c.l.b16 %v154
    %v608 = vunpack.c.h.b16 %v154
    %v609 = vunpack.c.l.b16 %v155
    %v610 = vunpack.c.h.b16 %v155
    %v611 = vpack.c.b16 %v417, %v415
    %v612 = vpack.c.b16 %v418, %v416
    %v613 = vpack.c.b16 %v421, %v419
    %v614 = vpack.c.b16 %v422, %v420
    %v615 = vpack.c.b16 %v425, %v423
    %v616 = vpack.c.b16 %v426, %v424
    %v617 = vpack.c.b16 %v429, %v427
    %v618 = vpack.c.b16 %v430, %v428
    %v619 = vpack.c.b16 %v433, %v431
    %v620 = vpack.c.b16 %v434, %v432
    %v621 = vpack.c.b16 %v437, %v435
    %v622 = vpack.c.b16 %v438, %v436
    %v623 = vpack.c.b16 %v441, %v439
    %v624 = vpack.c.b16 %v442, %v440
    %v625 = vpack.c.b16 %v445, %v443
    %v626 = vpack.c.b16 %v446, %v444
    %v627 = vpack.c.b16 %v449, %v447
    %v628 = vpack.c.b16 %v450, %v448
    %v629 = vpack.c.b16 %v453, %v451
    %v630 = vpack.c.b16 %v454, %v452
    %v631 = vpack.c.b16 %v457, %v455
    %v632 = vpack.c.b16 %v458, %v456
    %v633 = vpack.c.b16 %v461, %v459
    %v634 = vpack.c.b16 %v462, %v460
    %v635 = vpack.c.b16 %v465, %v463
    %v636 = vpack.c.b16 %v466, %v464
    %v637 = vpack.c.b16 %v469, %v467
    %v638 = vpack.c.b16 %v470, %v468
    %v639 = vpack.c.b16 %v473, %v471
    %v640 = vpack.c.b16 %v474, %v472
    %v641 = vpack.c.b16 %v477, %v475
    %v642 = vpack.c.b16 %v478, %v476
    %v643 = vpack.c.b16 %v481, %v479
    %v644 = vpack.c.b16 %v482, %v480
    %v645 = vpack.c.b16 %v485, %v483
    %v646 = vpack.c.b16 %v486, %v484
    %v647 = vpack.c.b16 %v489, %v487
    %v648 = vpack.c.b16 %v490, %v488
    %v649 = vpack.c.b16 %v493, %v491
    %v650 = vpack.c.b16 %v494, %v492
    %v651 = vpack.c.b16 %v497, %v495
    %v652 = vpack.c.b16 %v498, %v496
    %v653 = vpack.c.b16 %v501, %v499
    %v654 = vpack.c.b16 %v502, %v500
    %v655 = vpack.c.b16 %v505, %v503
    %v656 = vpack.c.b16 %v506, %v504
    %v657 = vpack.c.b16 %v509, %v507
    %v658 = vpack.c.b16 %v510, %v508
    %v659 = vpack.c.b16 %v513, %v511
    %v660 = vpack.c.b16 %v514, %v512
    %v661 = vpack.c.b16 %v517, %v515
    %v662 = vpack.c.b16 %v518, %v516
    %v663 = vpack.c.b16 %v521, %v519
    %v664 = vpack.c.b16 %v522, %v520
    %v665 = vpack.c.b16 %v525, %v523
    %v666 = vpack.c.b16 %v526, %v524
    %v667 = vpack.c.b16 %v529, %v527
    %v668 = vpack.c.b16 %v530, %v528
    %v669 = vpack.c.b16 %v533, %v531
    %v670 = vpack.c.b16 %v534, %v532
    %v671 = vpack.c.b16 %v537, %v535
    %v672 = vpack.c.b16 %v538, %v536
    %v673 = vpack.c.b16 %v541, %v539
    %v674 = vpack.c.b16 %v542, %v540
    %v675 = vpack.c.b16 %v545, %v543
    %v676 = vpack.c.b16 %v546, %v544
    %v677 = vpack.c.b16 %v549, %v547
    %v678 = vpack.c.b16 %v550, %v548
    %v679 = vpack.c.b16 %v553, %v551
    %v680 = vpack.c.b16 %v554, %v552
    %v681 = vpack.c.b16 %v557, %v555
    %v682 = vpack.c.b16 %v558, %v556
    %v683 = vpack.c.b16 %v561, %v559
    %v684 = vpack.c.b16 %v562, %v560
    %v685 = vpack.c.b16 %v565, %v563
    %v686 = vpack.c.b16 %v566, %v564
    %v687 = vpack.c.b16 %v569, %v567
    %v688 = vpack.c.b16 %v570, %v568
    %v689 = vpack.c.b16 %v573, %v571
    %v690 = vpack.c.b16 %v574, %v572
    %v691 = vpack.c.b16 %v577, %v575
    %v692 = vpack.c.b16 %v578, %v576
    %v693 = vpack.c.b16 %v581, %v579
    %v694 = vpack.c.b16 %v582, %v580
    %v695 = vpack.c.b16 %v585, %v583
    %v696 = vpack.c.b16 %v586, %v584
    %v697 = vpack.c.b16 %v589, %v587
    %v698 = vpack.c.b16 %v590, %v588
    %v699 = vpack.c.b16 %v593, %v591
    %v700 = vpack.c.b16 %v594, %v592
    %v701 = vpack.c.b16 %v597, %v595
    %v702 = vpack.c.b16 %v598, %v596
    %v703 = vpack.c.b16 %v601, %v599
    %v704 = vpack.c.b16 %v602, %v600
    %v705 = vpack.c.b16 %v605, %v603
    %v706 = vpack.c.b16 %v606, %v604
    %v707 = vpack.c.b16 %v609, %v607
    %v708 = vpack.c.b16 %v610, %v608
    %vm807 = vcmask 130048
    %v809 = vsel %vm807, %v307, 0
    %811 = vmatprep.subr.bf16.mxu0 %v612
    %812 = vmatpush1.bf16.msra.mxu0 %v611
    %813 = vmatprep.subr.bf16.mxu0 %v614
    %814 = vmatpush1.bf16.msra.mxu0 %v613
    %815 = vmatprep.subr.bf16.mxu0 %v616
    %816 = vmatpush1.bf16.msra.mxu0 %v615
    %817 = vmatprep.subr.bf16.mxu0 %v618
    %818 = vmatpush1.bf16.msra.mxu0 %v617
    %819 = vmatprep.subr.bf16.mxu0 %v620
    %820 = vmatpush1.bf16.msra.mxu0 %v619
    %821 = vmatprep.subr.bf16.mxu0 %v622
    %822 = vmatpush1.bf16.msra.mxu0 %v621
    %823 = vmatprep.subr.bf16.mxu0 %v624
    %824 = vmatpush1.bf16.msra.mxu0 %v623
    %825 = vmatprep.subr.bf16.mxu0 %v626
    %826 = vmatpush1.bf16.msra.mxu0 %v625
    %827 = vmatprep.subr.bf16.mxu0 %v628
    %828 = vmatpush1.bf16.msra.mxu0 %v627
    %829 = vmatprep.subr.bf16.mxu0 %v630
    %830 = vmatpush1.bf16.msra.mxu0 %v629
    %831 = vmatprep.subr.bf16.mxu0 %v632
    %832 = vmatpush1.bf16.msra.mxu0 %v631
    %833 = vmatprep.subr.bf16.mxu0 %v634
    %834 = vmatpush1.bf16.msra.mxu0 %v633
    %835 = vmatprep.subr.bf16.mxu0 %v636
    %836 = vmatpush1.bf16.msra.mxu0 %v635
    %837 = vmatprep.subr.bf16.mxu0 %v638
    %838 = vmatpush1.bf16.msra.mxu0 %v637
    %839 = vmatprep.subr.bf16.mxu0 %v640
    %840 = vmatpush1.bf16.msra.mxu0 %v639
    %841 = vmatprep.subr.bf16.mxu0 %v642
    %842 = vmatpush1.bf16.msra.mxu0 %v641
    %843 = vmatprep.mubr.bf16.mxu0 %v308
    %844 = vmatmul.mubr.bf16.gmra.mrb[0].mxu0 %v304
    %v845 = vpop.f32.mrb[0].mxu0
    %v846 = vadd.f32 %v161, %v845
    %v847 = vpop.f32.mrb[0].mxu0
    %v848 = vadd.f32 %v165, %v847
    %v849 = vpop.f32.mrb[0].mxu0
    %v850 = vadd.f32 %v161, %v849
    %v851 = vpop.f32.mrb[0].mxu0
    %v852 = vadd.f32 %v165, %v851
    %853 = vdwg.mxu0
    %854 = vmatprep.subr.bf16.mxu0 %v644
    %855 = vmatpush1.bf16.msra.mxu0 %v643
    %856 = vmatprep.subr.bf16.mxu0 %v646
    %857 = vmatpush1.bf16.msra.mxu0 %v645
    %858 = vmatprep.subr.bf16.mxu0 %v648
    %859 = vmatpush1.bf16.msra.mxu0 %v647
    %860 = vmatprep.subr.bf16.mxu0 %v650
    %861 = vmatpush1.bf16.msra.mxu0 %v649
    %862 = vmatprep.subr.bf16.mxu0 %v652
    %863 = vmatpush1.bf16.msra.mxu0 %v651
    %864 = vmatprep.subr.bf16.mxu0 %v654
    %865 = vmatpush1.bf16.msra.mxu0 %v653
    %866 = vmatprep.subr.bf16.mxu0 %v656
    %867 = vmatpush1.bf16.msra.mxu0 %v655
    %868 = vmatprep.subr.bf16.mxu0 %v658
    %869 = vmatpush1.bf16.msra.mxu0 %v657
    %870 = vmatprep.subr.bf16.mxu0 %v660
    %871 = vmatpush1.bf16.msra.mxu0 %v659
    %872 = vmatprep.subr.bf16.mxu0 %v662
    %873 = vmatpush1.bf16.msra.mxu0 %v661
    %874 = vmatprep.subr.bf16.mxu0 %v664
    %875 = vmatpush1.bf16.msra.mxu0 %v663
    %876 = vmatprep.subr.bf16.mxu0 %v666
    %877 = vmatpush1.bf16.msra.mxu0 %v665
    %878 = vmatprep.subr.bf16.mxu0 %v668
    %879 = vmatpush1.bf16.msra.mxu0 %v667
    %880 = vmatprep.subr.bf16.mxu0 %v670
    %881 = vmatpush1.bf16.msra.mxu0 %v669
    %882 = vmatprep.subr.bf16.mxu0 %v672
    %883 = vmatpush1.bf16.msra.mxu0 %v671
    %884 = vmatprep.subr.bf16.mxu0 %v674
    %885 = vmatpush1.bf16.msra.mxu0 %v673
    %886 = vmatprep.mubr.bf16.mxu0 %v309
    %887 = vmatmul.mubr.bf16.gmra.mrb[0].mxu0 %v305
    %v888 = vpop.f32.mrb[0].mxu0
    %v889 = vadd.f32 %v846, %v888
    %v890 = vpop.f32.mrb[0].mxu0
    %v891 = vadd.f32 %v848, %v890
    %v892 = vpop.f32.mrb[0].mxu0
    %v893 = vadd.f32 %v850, %v892
    %v894 = vpop.f32.mrb[0].mxu0
    %v895 = vadd.f32 %v852, %v894
    %896 = vdwg.mxu0
    %897 = vmatprep.subr.bf16.mxu0 %v676
    %898 = vmatpush1.bf16.msra.mxu0 %v675
    %899 = vmatprep.subr.bf16.mxu0 %v678
    %900 = vmatpush1.bf16.msra.mxu0 %v677
    %901 = vmatprep.subr.bf16.mxu0 %v680
    %902 = vmatpush1.bf16.msra.mxu0 %v679
    %903 = vmatprep.subr.bf16.mxu0 %v682
    %904 = vmatpush1.bf16.msra.mxu0 %v681
    %905 = vmatprep.subr.bf16.mxu0 %v684
    %906 = vmatpush1.bf16.msra.mxu0 %v683
    %907 = vmatprep.subr.bf16.mxu0 %v686
    %908 = vmatpush1.bf16.msra.mxu0 %v685
    %909 = vmatprep.subr.bf16.mxu0 %v688
    %910 = vmatpush1.bf16.msra.mxu0 %v687
    %911 = vmatprep.subr.bf16.mxu0 %v690
    %912 = vmatpush1.bf16.msra.mxu0 %v689
    %913 = vmatprep.subr.bf16.mxu0 %v692
    %914 = vmatpush1.bf16.msra.mxu0 %v691
    %915 = vmatprep.subr.bf16.mxu0 %v694
    %916 = vmatpush1.bf16.msra.mxu0 %v693
    %917 = vmatprep.subr.bf16.mxu0 %v696
    %918 = vmatpush1.bf16.msra.mxu0 %v695
    %919 = vmatprep.subr.bf16.mxu0 %v698
    %920 = vmatpush1.bf16.msra.mxu0 %v697
    %921 = vmatprep.subr.bf16.mxu0 %v700
    %922 = vmatpush1.bf16.msra.mxu0 %v699
    %923 = vmatprep.subr.bf16.mxu0 %v702
    %924 = vmatpush1.bf16.msra.mxu0 %v701
    %925 = vmatprep.subr.bf16.mxu0 %v704
    %926 = vmatpush1.bf16.msra.mxu0 %v703
    %927 = vmatprep.subr.bf16.mxu0 %v706
    %928 = vmatpush1.bf16.msra.mxu0 %v705
    %929 = vmatprep.mubr.bf16.mxu0 %v310
    %930 = vmatmul.mubr.bf16.gmra.mrb[0].mxu0 %v306
    %v931 = vpop.f32.mrb[0].mxu0
    %v932 = vadd.f32 %v889, %v931
    %v933 = vpop.f32.mrb[0].mxu0
    %v934 = vadd.f32 %v891, %v933
    %v935 = vpop.f32.mrb[0].mxu0
    %v936 = vadd.f32 %v893, %v935
    %v937 = vpop.f32.mrb[0].mxu0
    %v938 = vadd.f32 %v895, %v937
    %939 = vdwg.mxu0
    %940 = vmatprep.subr.bf16.mxu0 %v708
    %941 = vmatpush1.bf16.msra.mxu0 %v707
    %942 = vmatprep.subr.bf16.mxu0 0
    %943 = vmatpush1.bf16.msra.mxu0 0
    %944 = vmatprep.subr.bf16.mxu0 0
    %945 = vmatpush1.bf16.msra.mxu0 0
    %946 = vmatprep.subr.bf16.mxu0 0
    %947 = vmatpush1.bf16.msra.mxu0 0
    %948 = vmatprep.subr.bf16.mxu0 0
    %949 = vmatpush1.bf16.msra.mxu0 0
    %950 = vmatprep.subr.bf16.mxu0 0
    %951 = vmatpush1.bf16.msra.mxu0 0
    %952 = vmatprep.subr.bf16.mxu0 0
    %953 = vmatpush1.bf16.msra.mxu0 0
    %954 = vmatprep.subr.bf16.mxu0 0
    %955 = vmatpush1.bf16.msra.mxu0 0
    %956 = vmatprep.subr.bf16.mxu0 0
    %957 = vmatpush1.bf16.msra.mxu0 0
    %958 = vmatprep.subr.bf16.mxu0 0
    %959 = vmatpush1.bf16.msra.mxu0 0
    %960 = vmatprep.subr.bf16.mxu0 0
    %961 = vmatpush1.bf16.msra.mxu0 0
    %962 = vmatprep.subr.bf16.mxu0 0
    %963 = vmatpush1.bf16.msra.mxu0 0
    %964 = vmatprep.subr.bf16.mxu0 0
    %965 = vmatpush1.bf16.msra.mxu0 0
    %966 = vmatprep.subr.bf16.mxu0 0
    %967 = vmatpush1.bf16.msra.mxu0 0
    %968 = vmatprep.subr.bf16.mxu0 0
    %969 = vmatpush1.bf16.msra.mxu0 0
    %970 = vmatprep.subr.bf16.mxu0 0
    %971 = vmatpush1.bf16.msra.mxu0 0
    %972 = vmatprep.mubr.bf16.mxu0 0
    %973 = vmatmul.mubr.bf16.gmra.mrb[0].mxu0 %v809
    %v974 = vpop.f32.mrb[0].mxu0
    %v975 = vadd.f32 %v932, %v974
    %v976 = vpop.f32.mrb[0].mxu0
    %v977 = vadd.f32 %v934, %v976
    %v978 = vpop.f32.mrb[0].mxu0
    %v979 = vadd.f32 %v936, %v978
    %v980 = vpop.f32.mrb[0].mxu0
    %v981 = vadd.f32 %v938, %v980
    %982 = vdwg.mxu0
    %v983 = vmax.f32 %v975, 0.0
    %v984 = vmax.f32 %v977, 0.0
    %v985 = vmax.f32 %v979, 0.0
    %v986 = vmax.f32 %v981, 0.0
    %v987 = vpack.c.bf16 %v985, %v983
    %v988 = vpack.c.bf16 %v986, %v984
    %v989 = vld [vmem:[%s4] sm:$0xf]
    %v990 = vld [vmem:[%s4 + $0x4] sm:$0xf]
    %v991 = vld [vmem:[%s4 + $0x8] sm:$0xf]
    %v992 = vld [vmem:[%s4 + $0xc] sm:$0xf]
    %v993 = vld [vmem:[%s4 + $0x10] sm:$0xf]
    %v994 = vld [vmem:[%s4 + $0x14] sm:$0xf]
    %v995 = vld [vmem:[%s4 + $0x18] sm:$0xf]
    %v996 = vld [vmem:[%s4 + $0x1c] sm:$0xf]
    %v997 = vld [vmem:[%s4 + $0x20] sm:$0xf]
    %v998 = vld [vmem:[%s4 + $0x24] sm:$0xf]
    %v999 = vld [vmem:[%s4 + $0x28] sm:$0xf]
    %v1000 = vld [vmem:[%s4 + $0x2c] sm:$0xf]
    %v1001 = vld [vmem:[%s4 + $0x30] sm:$0xf]
    %v1002 = vld [vmem:[%s4 + $0x34] sm:$0xf]
    %v1003 = vld [vmem:[%s4 + $0x38] sm:$0xf]
    %v1004 = vld [vmem:[%s4 + $0x3c] sm:$0xf]
    %v1005 = vld [vmem:[%s4 + $0x40] sm:$0xf]
    %v1006 = vld [vmem:[%s4 + $0x44] sm:$0xf]
    %v1007 = vld [vmem:[%s4 + $0x48] sm:$0xf]
    %v1008 = vld [vmem:[%s4 + $0x4c] sm:$0xf]
    %v1009 = vld [vmem:[%s4 + $0x50] sm:$0xf]
    %v1010 = vld [vmem:[%s4 + $0x54] sm:$0xf]
    %v1011 = vld [vmem:[%s4 + $0x58] sm:$0xf]
    %v1012 = vld [vmem:[%s4 + $0x5c] sm:$0xf]
    %v1013 = vld [vmem:[%s4 + $0x60] sm:$0xf]
    %v1014 = vld [vmem:[%s4 + $0x64] sm:$0xf]
    %v1015 = vld [vmem:[%s4 + $0x68] sm:$0xf]
    %v1016 = vld [vmem:[%s4 + $0x6c] sm:$0xf]
    %v1017 = vld [vmem:[%s4 + $0x70] sm:$0xf]
    %v1018 = vld [vmem:[%s4 + $0x74] sm:$0xf]
    %v1019 = vld [vmem:[%s4 + $0x78] sm:$0xf]
    %v1020 = vld [vmem:[%s4 + $0x7c] sm:$0xf]
    %v1021 = vld [vmem:[%s5] sm:$0x1]
    %v1023 = vlaneseq
    %v1024 = vshrl.u32 %v1023, 7
    %v1025 = vsub.s32 0, %v1024
    %v1026 = vrot.slane %v1021, %v1025
    %v1060 = vunpack.c.l.b16 %v989
    %v1061 = vunpack.c.l.b16 %v990
    %v1062 = vunpack.c.l.b16 %v991
    %v1063 = vunpack.c.l.b16 %v992
    %v1064 = vunpack.c.l.b16 %v993
    %v1065 = vunpack.c.l.b16 %v994
    %v1066 = vunpack.c.l.b16 %v995
    %v1067 = vunpack.c.l.b16 %v996
    %v1068 = vunpack.c.l.b16 %v997
    %v1069 = vunpack.c.l.b16 %v998
    %v1070 = vunpack.c.l.b16 %v999
    %v1071 = vunpack.c.l.b16 %v1000
    %v1072 = vunpack.c.l.b16 %v1001
    %v1073 = vunpack.c.l.b16 %v1002
    %v1074 = vunpack.c.l.b16 %v1003
    %v1075 = vunpack.c.l.b16 %v1004
    %v1076 = vunpack.c.l.b16 %v1005
    %v1077 = vunpack.c.l.b16 %v1006
    %v1078 = vunpack.c.l.b16 %v1007
    %v1079 = vunpack.c.l.b16 %v1008
    %v1080 = vunpack.c.l.b16 %v1009
    %v1081 = vunpack.c.l.b16 %v1010
    %v1082 = vunpack.c.l.b16 %v1011
    %v1083 = vunpack.c.l.b16 %v1012
    %v1084 = vunpack.c.l.b16 %v1013
    %v1085 = vunpack.c.l.b16 %v1014
    %v1086 = vunpack.c.l.b16 %v1015
    %v1087 = vunpack.c.l.b16 %v1016
    %v1088 = vunpack.c.l.b16 %v1017
    %v1089 = vunpack.c.l.b16 %v1018
    %v1090 = vunpack.c.l.b16 %v1019
    %v1091 = vunpack.c.l.b16 %v1020
    %v1092 = vpack.c.b16 %v1061, %v1060
    %v1093 = vpack.c.b16 %v1063, %v1062
    %v1094 = vpack.c.b16 %v1065, %v1064
    %v1095 = vpack.c.b16 %v1067, %v1066
    %v1096 = vpack.c.b16 %v1069, %v1068
    %v1097 = vpack.c.b16 %v1071, %v1070
    %v1098 = vpack.c.b16 %v1073, %v1072
    %v1099 = vpack.c.b16 %v1075, %v1074
    %v1100 = vpack.c.b16 %v1077, %v1076
    %v1101 = vpack.c.b16 %v1079, %v1078
    %v1102 = vpack.c.b16 %v1081, %v1080
    %v1103 = vpack.c.b16 %v1083, %v1082
    %v1104 = vpack.c.b16 %v1085, %v1084
    %v1105 = vpack.c.b16 %v1087, %v1086
    %v1106 = vpack.c.b16 %v1089, %v1088
    %v1107 = vpack.c.b16 %v1091, %v1090
    %1124 = vmatprep.subr.bf16.mxu0 0
    %1125 = vmatpush1.bf16.msra.mxu0 %v1092
    %1126 = vmatprep.subr.bf16.mxu0 0
    %1127 = vmatpush1.bf16.msra.mxu0 %v1093
    %1128 = vmatprep.subr.bf16.mxu0 0
    %1129 = vmatpush1.bf16.msra.mxu0 %v1094
    %1130 = vmatprep.subr.bf16.mxu0 0
    %1131 = vmatpush1.bf16.msra.mxu0 %v1095
    %1132 = vmatprep.subr.bf16.mxu0 0
    %1133 = vmatpush1.bf16.msra.mxu0 %v1096
    %1134 = vmatprep.subr.bf16.mxu0 0
    %1135 = vmatpush1.bf16.msra.mxu0 %v1097
    %1136 = vmatprep.subr.bf16.mxu0 0
    %1137 = vmatpush1.bf16.msra.mxu0 %v1098
    %1138 = vmatprep.subr.bf16.mxu0 0
    %1139 = vmatpush1.bf16.msra.mxu0 %v1099
    %1140 = vmatprep.subr.bf16.mxu0 0
    %1141 = vmatpush1.bf16.msra.mxu0 %v1100
    %1142 = vmatprep.subr.bf16.mxu0 0
    %1143 = vmatpush1.bf16.msra.mxu0 %v1101
    %1144 = vmatprep.subr.bf16.mxu0 0
    %1145 = vmatpush1.bf16.msra.mxu0 %v1102
    %1146 = vmatprep.subr.bf16.mxu0 0
    %1147 = vmatpush1.bf16.msra.mxu0 %v1103
    %1148 = vmatprep.subr.bf16.mxu0 0
    %1149 = vmatpush1.bf16.msra.mxu0 %v1104
    %1150 = vmatprep.subr.bf16.mxu0 0
    %1151 = vmatpush1.bf16.msra.mxu0 %v1105
    %1152 = vmatprep.subr.bf16.mxu0 0
    %1153 = vmatpush1.bf16.msra.mxu0 %v1106
    %1154 = vmatprep.subr.bf16.mxu0 0
    %1155 = vmatpush1.bf16.msra.mxu0 %v1107
    %1156 = vmatprep.mubr.bf16.mxu0 %v988
    %1157 = vmatmul.mubr.bf16.gmra.mrb[0].mxu0 %v987
    %v1158 = vpop.f32.mrb[0].mxu0
    %v1159 = vadd.f32 %v1026, %v1158
    %v1160 = vpop.f32.mrb[0].mxu0
    %v1161 = vpop.f32.mrb[0].mxu0
    %v1162 = vadd.f32 %v1026, %v1161
    %v1163 = vpop.f32.mrb[0].mxu0
    %1164 = vdwg.mxu0
    %v1165 = vmax.f32 %v1159, 0.0
    %v1166 = vmax.f32 %v1162, 0.0
    %v1167 = vpack.c.bf16 %v1166, %v1165
    %v1168 = vld [vmem:[%s6] sm:$0xf]
    %v1169 = vld [vmem:[%s6 + $0x4] sm:$0xf]
    %v1170 = vld [vmem:[%s6 + $0x8] sm:$0xf]
    %v1171 = vld [vmem:[%s6 + $0xc] sm:$0xf]
    %v1172 = vld [vmem:[%s6 + $0x10] sm:$0xf]
    %v1173 = vld [vmem:[%s6 + $0x14] sm:$0xf]
    %v1174 = vld [vmem:[%s6 + $0x18] sm:$0xf]
    %v1175 = vld [vmem:[%s6 + $0x1c] sm:$0xf]
    %v1176 = vld [vmem:[%s6 + $0x20] sm:$0xf]
    %v1177 = vld [vmem:[%s6 + $0x24] sm:$0xf]
    %v1178 = vld [vmem:[%s6 + $0x28] sm:$0xf]
    %v1179 = vld [vmem:[%s6 + $0x2c] sm:$0xf]
    %v1180 = vld [vmem:[%s6 + $0x30] sm:$0xf]
    %v1181 = vld [vmem:[%s6 + $0x34] sm:$0xf]
    %v1182 = vld [vmem:[%s6 + $0x38] sm:$0xf]
    %v1183 = vld [vmem:[%s6 + $0x3c] sm:$0xf]
    %v1184 = vld [vmem:[%s7] sm:$0x1]
    %v1186 = vlaneseq
    %v1187 = vshrl.u32 %v1186, 7
    %v1188 = vsub.s32 0, %v1187
    %v1189 = vrot.slane %v1184, %v1188
    %v1207 = vunpack.c.l.b16 %v1168
    %v1208 = vunpack.c.l.b16 %v1169
    %v1209 = vunpack.c.l.b16 %v1170
    %v1210 = vunpack.c.l.b16 %v1171
    %v1211 = vunpack.c.l.b16 %v1172
    %v1212 = vunpack.c.l.b16 %v1173
    %v1213 = vunpack.c.l.b16 %v1174
    %v1214 = vunpack.c.l.b16 %v1175
    %v1215 = vunpack.c.l.b16 %v1176
    %v1216 = vunpack.c.l.b16 %v1177
    %v1217 = vunpack.c.l.b16 %v1178
    %v1218 = vunpack.c.l.b16 %v1179
    %v1219 = vunpack.c.l.b16 %v1180
    %v1220 = vunpack.c.l.b16 %v1181
    %v1221 = vunpack.c.l.b16 %v1182
    %v1222 = vunpack.c.l.b16 %v1183
    %v1223 = vpack.c.b16 %v1208, %v1207
    %v1224 = vpack.c.b16 %v1210, %v1209
    %v1225 = vpack.c.b16 %v1212, %v1211
    %v1226 = vpack.c.b16 %v1214, %v1213
    %v1227 = vpack.c.b16 %v1216, %v1215
    %v1228 = vpack.c.b16 %v1218, %v1217
    %v1229 = vpack.c.b16 %v1220, %v1219
    %v1230 = vpack.c.b16 %v1222, %v1221
    %1239 = vmatprep.subr.bf16.mxu0 0
    %1240 = vmatpush1.bf16.msra.mxu0 %v1223
    %1241 = vmatprep.subr.bf16.mxu0 0
    %1242 = vmatpush1.bf16.msra.mxu0 %v1224
    %1243 = vmatprep.subr.bf16.mxu0 0
    %1244 = vmatpush1.bf16.msra.mxu0 %v1225
    %1245 = vmatprep.subr.bf16.mxu0 0
    %1246 = vmatpush1.bf16.msra.mxu0 %v1226
    %1247 = vmatprep.subr.bf16.mxu0 0
    %1248 = vmatpush1.bf16.msra.mxu0 %v1227
    %1249 = vmatprep.subr.bf16.mxu0 0
    %1250 = vmatpush1.bf16.msra.mxu0 %v1228
    %1251 = vmatprep.subr.bf16.mxu0 0
    %1252 = vmatpush1.bf16.msra.mxu0 %v1229
    %1253 = vmatprep.subr.bf16.mxu0 0
    %1254 = vmatpush1.bf16.msra.mxu0 %v1230
    %1255 = vmatprep.subr.bf16.mxu0 0
    %1256 = vmatpush1.bf16.msra.mxu0 0
    %1257 = vmatprep.subr.bf16.mxu0 0
    %1258 = vmatpush1.bf16.msra.mxu0 0
    %1259 = vmatprep.subr.bf16.mxu0 0
    %1260 = vmatpush1.bf16.msra.mxu0 0
    %1261 = vmatprep.subr.bf16.mxu0 0
    %1262 = vmatpush1.bf16.msra.mxu0 0
    %1263 = vmatprep.subr.bf16.mxu0 0
    %1264 = vmatpush1.bf16.msra.mxu0 0
    %1265 = vmatprep.subr.bf16.mxu0 0
    %1266 = vmatpush1.bf16.msra.mxu0 0
    %1267 = vmatprep.subr.bf16.mxu0 0
    %1268 = vmatpush1.bf16.msra.mxu0 0
    %1269 = vmatprep.subr.bf16.mxu0 0
    %1270 = vmatpush1.bf16.msra.mxu0 0
    %1271 = vmatprep.mubr.bf16.mxu0 0
    %1272 = vmatmul.mubr.bf16.gmra.mrb[0].mxu0 %v1167
    %v1273 = vpop.f32.mrb[0].mxu0
    %v1274 = vadd.f32 %v1189, %v1273
    %v1275 = vpop.f32.mrb[0].mxu0
    %v1276 = vpop.f32.mrb[0].mxu0
    %v1277 = vadd.f32 %v1189, %v1276
    %v1278 = vpop.f32.mrb[0].mxu0
    %1279 = vdwg.mxu0
    %1280 = vst [vmem:[#allocation2] sm:$0xff] %v1274
    %1281 = vst [vmem:[#allocation2 + $0x8] sm:$0xff] %v1277
    %v1282 = vmul.f32 %v1274, 1.442695
    %v1283 = vpow.pop %v1282
    %v1284 = vmul.f32 %v1277, 1.442695
    %v1285 = vpow.pop %v1284
    %v1286 = vld [vmem:[%s1] sm:$0xff]
    %v1287 = vld [vmem:[%s1 + $0x8] sm:$0xff]
    %1290 = vrot.lane.b32.xlu0 %v1286, 20
    %v1291 = vpop.permute.xlu0 %1290
    %1292 = vrot.lane.b32.xlu0 %v1287, 20
    %v1293 = vpop.permute.xlu0 %1292
    %v1296 = vmul.f32 %v1283, %v1291
    %v1297 = vmul.f32 %v1285, %v1293
    %1300 = vrot.lane.b32.xlu0 %v1296, 108
    %v1301 = vpop.permute.xlu0 %1300
    %1302 = vrot.lane.b32.xlu0 %v1297, 108
    %v1303 = vpop.permute.xlu0 %1302
    %v1306 = vadd.f32 %v1274, %v1301
    %v1307 = vadd.f32 %v1277, %v1303
    %v1308 = vpack.c.bf16 %v1307, %v1306
    %v1309 = vld [vmem:[%s8] sm:$0xf]
    %v1310 = vld [vmem:[%s8 + $0x4] sm:$0xf]
    %v1311 = vld [vmem:[%s8 + $0x8] sm:$0x3]
    %v1312 = vld [vmem:[%s9] sm:$0x1]
    %v1314 = vlaneseq
    %v1315 = vshrl.u32 %v1314, 7
    %v1316 = vsub.s32 0, %v1315
    %v1317 = vrot.slane %v1312, %v1316
    %v1322 = vunpack.c.l.b16 %v1309
    %v1323 = vunpack.c.l.b16 %v1310
    %v1324 = vunpack.c.l.b16 %v1311
    %v1325 = vpack.c.b16 %v1323, %v1322
    %v1326 = vpack.c.b16 %v1324, %v1324
    %vm1328 = vcmask 162816
    %v1330 = vsel %vm1328, %v1308, 0
    %vm1332 = vcmask 1041408
    %v1334 = vsel %vm1332, %v1326, 0
    %1336 = vmatprep.subr.bf16.mxu0 0
    %1337 = vmatpush1.bf16.msra.mxu0 %v1325
    %1338 = vmatprep.subr.bf16.mxu0 0
    %1339 = vmatpush1.bf16.msra.mxu0 %v1334
    %1340 = vmatprep.subr.bf16.mxu0 0
    %1341 = vmatpush1.bf16.msra.mxu0 0
    %1342 = vmatprep.subr.bf16.mxu0 0
    %1343 = vmatpush1.bf16.msra.mxu0 0
    %1344 = vmatprep.subr.bf16.mxu0 0
    %1345 = vmatpush1.bf16.msra.mxu0 0
    %1346 = vmatprep.subr.bf16.mxu0 0
    %1347 = vmatpush1.bf16.msra.mxu0 0
    %1348 = vmatprep.subr.bf16.mxu0 0
    %1349 = vmatpush1.bf16.msra.mxu0 0
    %1350 = vmatprep.subr.bf16.mxu0 0
    %1351 = vmatpush1.bf16.msra.mxu0 0
    %1352 = vmatprep.subr.bf16.mxu0 0
    %1353 = vmatpush1.bf16.msra.mxu0 0
    %1354 = vmatprep.subr.bf16.mxu0 0
    %1355 = vmatpush1.bf16.msra.mxu0 0
    %1356 = vmatprep.subr.bf16.mxu0 0
    %1357 = vmatpush1.bf16.msra.mxu0 0
    %1358 = vmatprep.subr.bf16.mxu0 0
    %1359 = vmatpush1.bf16.msra.mxu0 0
    %1360 = vmatprep.subr.bf16.mxu0 0
    %1361 = vmatpush1.bf16.msra.mxu0 0
    %1362 = vmatprep.subr.bf16.mxu0 0
    %1363 = vmatpush1.bf16.msra.mxu0 0
    %1364 = vmatprep.subr.bf16.mxu0 0
    %1365 = vmatpush1.bf16.msra.mxu0 0
    %1366 = vmatprep.subr.bf16.mxu0 0
    %1367 = vmatpush1.bf16.msra.mxu0 0
    %1368 = vmatprep.mubr.bf16.mxu0 0
    %1369 = vmatmul.mubr.bf16.gmra.mrb[0].mxu0 %v1330
    %v1370 = vpop.f32.mrb[0].mxu0
    %v1371 = vadd.f32 %v1317, %v1370
    %v1372 = vpop.f32.mrb[0].mxu0
    %v1373 = vpop.f32.mrb[0].mxu0
    %v1374 = vadd.f32 %v1317, %v1373
    %v1375 = vpop.f32.mrb[0].mxu0
    %1376 = vdwg.mxu0
    %v1377 = vmax.f32 %v1371, 0.0
    %v1378 = vmax.f32 %v1374, 0.0
    %v1379 = vpack.c.bf16 %v1378, %v1377
    %v1380 = vld [vmem:[%s10] sm:$0xff]
    %v1381 = vld [vmem:[%s10 + $0x8] sm:$0xff]
    %v1382 = vld [vmem:[%s10 + $0x10] sm:$0xff]
    %v1383 = vld [vmem:[%s10 + $0x18] sm:$0xff]
    %v1384 = vld [vmem:[%s10 + $0x20] sm:$0xff]
    %v1385 = vld [vmem:[%s10 + $0x28] sm:$0xff]
    %v1386 = vld [vmem:[%s10 + $0x30] sm:$0xff]
    %v1387 = vld [vmem:[%s10 + $0x38] sm:$0xff]
    %v1388 = vld [vmem:[%s10 + $0x40] sm:$0xff]
    %v1389 = vld [vmem:[%s10 + $0x48] sm:$0xff]
    %v1390 = vld [vmem:[%s10 + $0x50] sm:$0xff]
    %v1391 = vld [vmem:[%s10 + $0x58] sm:$0xff]
    %v1392 = vld [vmem:[%s10 + $0x60] sm:$0xff]
    %v1393 = vld [vmem:[%s10 + $0x68] sm:$0xff]
    %v1394 = vld [vmem:[%s10 + $0x70] sm:$0xff]
    %v1395 = vld [vmem:[%s10 + $0x78] sm:$0xff]
    %v1396 = vld [vmem:[%s11] sm:$0x3]
    %v1398 = vlaneseq
    %v1399 = vshrl.u32 %v1398, 7
    %v1400 = vsub.s32 0, %v1399
    %v1401 = vrot.slane %v1396, %v1400
    %v1402 = vlaneseq
    %v1403 = vshrl.u32 %v1402, 7
    %v1404 = vsub.s32 1, %v1403
    %v1405 = vrot.slane %v1396, %v1404
    %v1424 = vunpack.c.l.b16 %v1380
    %v1425 = vunpack.c.h.b16 %v1380
    %v1426 = vunpack.c.l.b16 %v1381
    %v1427 = vunpack.c.h.b16 %v1381
    %v1428 = vunpack.c.l.b16 %v1382
    %v1429 = vunpack.c.h.b16 %v1382
    %v1430 = vunpack.c.l.b16 %v1383
    %v1431 = vunpack.c.h.b16 %v1383
    %v1432 = vunpack.c.l.b16 %v1384
    %v1433 = vunpack.c.h.b16 %v1384
    %v1434 = vunpack.c.l.b16 %v1385
    %v1435 = vunpack.c.h.b16 %v1385
    %v1436 = vunpack.c.l.b16 %v1386
    %v1437 = vunpack.c.h.b16 %v1386
    %v1438 = vunpack.c.l.b16 %v1387
    %v1439 = vunpack.c.h.b16 %v1387
    %v1440 = vunpack.c.l.b16 %v1388
    %v1441 = vunpack.c.h.b16 %v1388
    %v1442 = vunpack.c.l.b16 %v1389
    %v1443 = vunpack.c.h.b16 %v1389
    %v1444 = vunpack.c.l.b16 %v1390
    %v1445 = vunpack.c.h.b16 %v1390
    %v1446 = vunpack.c.l.b16 %v1391
    %v1447 = vunpack.c.h.b16 %v1391
    %v1448 = vunpack.c.l.b16 %v1392
    %v1449 = vunpack.c.h.b16 %v1392
    %v1450 = vunpack.c.l.b16 %v1393
    %v1451 = vunpack.c.h.b16 %v1393
    %v1452 = vunpack.c.l.b16 %v1394
    %v1453 = vunpack.c.h.b16 %v1394
    %v1454 = vunpack.c.l.b16 %v1395
    %v1455 = vunpack.c.h.b16 %v1395
    %v1456 = vpack.c.b16 %v1426, %v1424
    %v1457 = vpack.c.b16 %v1427, %v1425
    %v1458 = vpack.c.b16 %v1430, %v1428
    %v1459 = vpack.c.b16 %v1431, %v1429
    %v1460 = vpack.c.b16 %v1434, %v1432
    %v1461 = vpack.c.b16 %v1435, %v1433
    %v1462 = vpack.c.b16 %v1438, %v1436
    %v1463 = vpack.c.b16 %v1439, %v1437
    %v1464 = vpack.c.b16 %v1442, %v1440
    %v1465 = vpack.c.b16 %v1443, %v1441
    %v1466 = vpack.c.b16 %v1446, %v1444
    %v1467 = vpack.c.b16 %v1447, %v1445
    %v1468 = vpack.c.b16 %v1450, %v1448
    %v1469 = vpack.c.b16 %v1451, %v1449
    %v1470 = vpack.c.b16 %v1454, %v1452
    %v1471 = vpack.c.b16 %v1455, %v1453
    %1488 = vmatprep.subr.bf16.mxu0 %v1457
    %1489 = vmatpush1.bf16.msra.mxu0 %v1456
    %1490 = vmatprep.subr.bf16.mxu0 %v1459
    %1491 = vmatpush1.bf16.msra.mxu0 %v1458
    %1492 = vmatprep.subr.bf16.mxu0 %v1461
    %1493 = vmatpush1.bf16.msra.mxu0 %v1460
    %1494 = vmatprep.subr.bf16.mxu0 %v1463
    %1495 = vmatpush1.bf16.msra.mxu0 %v1462
    %1496 = vmatprep.subr.bf16.mxu0 %v1465
    %1497 = vmatpush1.bf16.msra.mxu0 %v1464
    %1498 = vmatprep.subr.bf16.mxu0 %v1467
    %1499 = vmatpush1.bf16.msra.mxu0 %v1466
    %1500 = vmatprep.subr.bf16.mxu0 %v1469
    %1501 = vmatpush1.bf16.msra.mxu0 %v1468
    %1502 = vmatprep.subr.bf16.mxu0 %v1471
    %1503 = vmatpush1.bf16.msra.mxu0 %v1470
    %1504 = vmatprep.subr.bf16.mxu0 0
    %1505 = vmatpush1.bf16.msra.mxu0 0
    %1506 = vmatprep.subr.bf16.mxu0 0
    %1507 = vmatpush1.bf16.msra.mxu0 0
    %1508 = vmatprep.subr.bf16.mxu0 0
    %1509 = vmatpush1.bf16.msra.mxu0 0
    %1510 = vmatprep.subr.bf16.mxu0 0
    %1511 = vmatpush1.bf16.msra.mxu0 0
    %1512 = vmatprep.subr.bf16.mxu0 0
    %1513 = vmatpush1.bf16.msra.mxu0 0
    %1514 = vmatprep.subr.bf16.mxu0 0
    %1515 = vmatpush1.bf16.msra.mxu0 0
    %1516 = vmatprep.subr.bf16.mxu0 0
    %1517 = vmatpush1.bf16.msra.mxu0 0
    %1518 = vmatprep.subr.bf16.mxu0 0
    %1519 = vmatpush1.bf16.msra.mxu0 0
    %1520 = vmatprep.mubr.bf16.mxu0 0
    %1521 = vmatmul.mubr.bf16.gmra.mrb[0].mxu0 %v1379
    %v1522 = vpop.f32.mrb[0].mxu0
    %v1523 = vadd.f32 %v1401, %v1522
    %v1524 = vpop.f32.mrb[0].mxu0
    %v1525 = vadd.f32 %v1405, %v1524
    %v1526 = vpop.f32.mrb[0].mxu0
    %v1527 = vadd.f32 %v1401, %v1526
    %v1528 = vpop.f32.mrb[0].mxu0
    %v1529 = vadd.f32 %v1405, %v1528
    %1530 = vdwg.mxu0
    %v1531 = vmax.f32 %v1523, 0.0
    %v1532 = vmax.f32 %v1525, 0.0
    %v1533 = vmax.f32 %v1527, 0.0
    %v1534 = vmax.f32 %v1529, 0.0
    %v1535 = vpack.c.bf16 %v1533, %v1531
    %v1536 = vpack.c.bf16 %v1534, %v1532
    %v1537 = vld [vmem:[%s12] sm:$0xff]
    %v1538 = vld [vmem:[%s12 + $0x8] sm:$0xff]
    %v1539 = vld [vmem:[%s12 + $0x10] sm:$0xff]
    %v1540 = vld [vmem:[%s12 + $0x18] sm:$0xf]
    %v1541 = vld [vmem:[%s12 + $0x1c] sm:$0xff]
    %v1542 = vld [vmem:[%s12 + $0x24] sm:$0xff]
    %v1543 = vld [vmem:[%s12 + $0x2c] sm:$0xff]
    %v1544 = vld [vmem:[%s12 + $0x34] sm:$0xf]
    %v1545 = vld [vmem:[%s12 + $0x38] sm:$0xff]
    %v1546 = vld [vmem:[%s12 + $0x40] sm:$0xff]
    %v1547 = vld [vmem:[%s12 + $0x48] sm:$0xff]
    %v1548 = vld [vmem:[%s12 + $0x50] sm:$0xf]
    %v1549 = vld [vmem:[%s12 + $0x54] sm:$0xff]
    %v1550 = vld [vmem:[%s12 + $0x5c] sm:$0xff]
    %v1551 = vld [vmem:[%s12 + $0x64] sm:$0xff]
    %v1552 = vld [vmem:[%s12 + $0x6c] sm:$0xf]
    %v1553 = vld [vmem:[%s12 + $0x70] sm:$0xff]
    %v1554 = vld [vmem:[%s12 + $0x78] sm:$0xff]
    %v1555 = vld [vmem:[%s12 + $0x80] sm:$0xff]
    %v1556 = vld [vmem:[%s12 + $0x88] sm:$0xf]
    %v1557 = vld [vmem:[%s12 + $0x8c] sm:$0xff]
    %v1558 = vld [vmem:[%s12 + $0x94] sm:$0xff]
    %v1559 = vld [vmem:[%s12 + $0x9c] sm:$0xff]
    %v1560 = vld [vmem:[%s12 + $0xa4] sm:$0xf]
    %v1561 = vld [vmem:[%s12 + $0xa8] sm:$0xff]
    %v1562 = vld [vmem:[%s12 + $0xb0] sm:$0xff]
    %v1563 = vld [vmem:[%s12 + $0xb8] sm:$0xff]
    %v1564 = vld [vmem:[%s12 + $0xc0] sm:$0xf]
    %v1565 = vld [vmem:[%s12 + $0xc4] sm:$0xff]
    %v1566 = vld [vmem:[%s12 + $0xcc] sm:$0xff]
    %v1567 = vld [vmem:[%s12 + $0xd4] sm:$0xff]
    %v1568 = vld [vmem:[%s12 + $0xdc] sm:$0xf]
    %v1569 = vld [vmem:[%s12 + $0xe0] sm:$0xff]
    %v1570 = vld [vmem:[%s12 + $0xe8] sm:$0xff]
    %v1571 = vld [vmem:[%s12 + $0xf0] sm:$0xff]
    %v1572 = vld [vmem:[%s12 + $0xf8] sm:$0xf]
    %v1573 = vld [vmem:[%s12 + $0xfc] sm:$0xff]
    %v1574 = vld [vmem:[%s12 + $0x104] sm:$0xff]
    %v1575 = vld [vmem:[%s12 + $0x10c] sm:$0xff]
    %v1576 = vld [vmem:[%s12 + $0x114] sm:$0xf]
    %v1577 = vld [vmem:[%s12 + $0x118] sm:$0xff]
    %v1578 = vld [vmem:[%s12 + $0x120] sm:$0xff]
    %v1579 = vld [vmem:[%s12 + $0x128] sm:$0xff]
    %v1580 = vld [vmem:[%s12 + $0x130] sm:$0xf]
    %v1581 = vld [vmem:[%s12 + $0x134] sm:$0xff]
    %v1582 = vld [vmem:[%s12 + $0x13c] sm:$0xff]
    %v1583 = vld [vmem:[%s12 + $0x144] sm:$0xff]
    %v1584 = vld [vmem:[%s12 + $0x14c] sm:$0xf]
    %v1585 = vld [vmem:[%s12 + $0x150] sm:$0xff]
    %v1586 = vld [vmem:[%s12 + $0x158] sm:$0xff]
    %v1587 = vld [vmem:[%s12 + $0x160] sm:$0xff]
    %v1588 = vld [vmem:[%s12 + $0x168] sm:$0xf]
    %v1589 = vld [vmem:[%s12 + $0x16c] sm:$0xff]
    %v1590 = vld [vmem:[%s12 + $0x174] sm:$0xff]
    %v1591 = vld [vmem:[%s12 + $0x17c] sm:$0xff]
    %v1592 = vld [vmem:[%s12 + $0x184] sm:$0xf]
    %v1593 = vld [vmem:[%s12 + $0x188] sm:$0xff]
    %v1594 = vld [vmem:[%s12 + $0x190] sm:$0xff]
    %v1595 = vld [vmem:[%s12 + $0x198] sm:$0xff]
    %v1596 = vld [vmem:[%s12 + $0x1a0] sm:$0xf]
    %v1597 = vld [vmem:[%s12 + $0x1a4] sm:$0xff]
    %v1598 = vld [vmem:[%s12 + $0x1ac] sm:$0xff]
    %v1599 = vld [vmem:[%s12 + $0x1b4] sm:$0xff]
    %v1600 = vld [vmem:[%s12 + $0x1bc] sm:$0xf]
    %v1601 = vld [vmem:[%s12 + $0x1c0] sm:$0xff]
    %v1602 = vld [vmem:[%s12 + $0x1c8] sm:$0xff]
    %v1603 = vld [vmem:[%s12 + $0x1d0] sm:$0xff]
    %v1604 = vld [vmem:[%s12 + $0x1d8] sm:$0xf]
    %v1605 = vld [vmem:[%s12 + $0x1dc] sm:$0xff]
    %v1606 = vld [vmem:[%s12 + $0x1e4] sm:$0xff]
    %v1607 = vld [vmem:[%s12 + $0x1ec] sm:$0xff]
    %v1608 = vld [vmem:[%s12 + $0x1f4] sm:$0xf]
    %v1609 = vld [vmem:[%s12 + $0x1f8] sm:$0xff]
    %v1610 = vld [vmem:[%s12 + $0x200] sm:$0xff]
    %v1611 = vld [vmem:[%s12 + $0x208] sm:$0xff]
    %v1612 = vld [vmem:[%s12 + $0x210] sm:$0xf]
    %v1613 = vld [vmem:[%s12 + $0x214] sm:$0xff]
    %v1614 = vld [vmem:[%s12 + $0x21c] sm:$0xff]
    %v1615 = vld [vmem:[%s12 + $0x224] sm:$0xff]
    %v1616 = vld [vmem:[%s12 + $0x22c] sm:$0xf]
    %v1617 = vld [vmem:[%s12 + $0x230] sm:$0xff]
    %v1618 = vld [vmem:[%s12 + $0x238] sm:$0xff]
    %v1619 = vld [vmem:[%s12 + $0x240] sm:$0xff]
    %v1620 = vld [vmem:[%s12 + $0x248] sm:$0xf]
    %v1621 = vld [vmem:[%s12 + $0x24c] sm:$0xff]
    %v1622 = vld [vmem:[%s12 + $0x254] sm:$0xff]
    %v1623 = vld [vmem:[%s12 + $0x25c] sm:$0xff]
    %v1624 = vld [vmem:[%s12 + $0x264] sm:$0xf]
    %v1625 = vld [vmem:[%s12 + $0x268] sm:$0xff]
    %v1626 = vld [vmem:[%s12 + $0x270] sm:$0xff]
    %v1627 = vld [vmem:[%s12 + $0x278] sm:$0xff]
    %v1628 = vld [vmem:[%s12 + $0x280] sm:$0xf]
    %v1629 = vld [vmem:[%s12 + $0x284] sm:$0xff]
    %v1630 = vld [vmem:[%s12 + $0x28c] sm:$0xff]
    %v1631 = vld [vmem:[%s12 + $0x294] sm:$0xff]
    %v1632 = vld [vmem:[%s12 + $0x29c] sm:$0xf]
    %v1633 = vld [vmem:[%s12 + $0x2a0] sm:$0xff]
    %v1634 = vld [vmem:[%s12 + $0x2a8] sm:$0xff]
    %v1635 = vld [vmem:[%s12 + $0x2b0] sm:$0xff]
    %v1636 = vld [vmem:[%s12 + $0x2b8] sm:$0xf]
    %v1637 = vld [vmem:[%s12 + $0x2bc] sm:$0xff]
    %v1638 = vld [vmem:[%s12 + $0x2c4] sm:$0xff]
    %v1639 = vld [vmem:[%s12 + $0x2cc] sm:$0xff]
    %v1640 = vld [vmem:[%s12 + $0x2d4] sm:$0xf]
    %v1641 = vld [vmem:[%s12 + $0x2d8] sm:$0xff]
    %v1642 = vld [vmem:[%s12 + $0x2e0] sm:$0xff]
    %v1643 = vld [vmem:[%s12 + $0x2e8] sm:$0xff]
    %v1644 = vld [vmem:[%s12 + $0x2f0] sm:$0xf]
    %v1645 = vld [vmem:[%s12 + $0x2f4] sm:$0xff]
    %v1646 = vld [vmem:[%s12 + $0x2fc] sm:$0xff]
    %v1647 = vld [vmem:[%s12 + $0x304] sm:$0xff]
    %v1648 = vld [vmem:[%s12 + $0x30c] sm:$0xf]
    %v1649 = vld [vmem:[%s12 + $0x310] sm:$0xff]
    %v1650 = vld [vmem:[%s12 + $0x318] sm:$0xff]
    %v1651 = vld [vmem:[%s12 + $0x320] sm:$0xff]
    %v1652 = vld [vmem:[%s12 + $0x328] sm:$0xf]
    %v1653 = vld [vmem:[%s12 + $0x32c] sm:$0xff]
    %v1654 = vld [vmem:[%s12 + $0x334] sm:$0xff]
    %v1655 = vld [vmem:[%s12 + $0x33c] sm:$0xff]
    %v1656 = vld [vmem:[%s12 + $0x344] sm:$0xf]
    %v1657 = vld [vmem:[%s12 + $0x348] sm:$0xff]
    %v1658 = vld [vmem:[%s12 + $0x350] sm:$0xff]
    %v1659 = vld [vmem:[%s12 + $0x358] sm:$0xff]
    %v1660 = vld [vmem:[%s12 + $0x360] sm:$0xf]
    %v1661 = vld [vmem:[%s12 + $0x364] sm:$0xff]
    %v1662 = vld [vmem:[%s12 + $0x36c] sm:$0xff]
    %v1663 = vld [vmem:[%s12 + $0x374] sm:$0xff]
    %v1664 = vld [vmem:[%s12 + $0x37c] sm:$0xf]
    %v1665 = vld [vmem:[%s13] sm:$0x7f]
    %v1667 = vlaneseq
    %v1668 = vshrl.u32 %v1667, 7
    %v1669 = vsub.s32 0, %v1668
    %v1670 = vrot.slane %v1665, %v1669
    %v1671 = vlaneseq
    %v1672 = vshrl.u32 %v1671, 7
    %v1673 = vsub.s32 1, %v1672
    %v1674 = vrot.slane %v1665, %v1673
    %v1675 = vlaneseq
    %v1676 = vshrl.u32 %v1675, 7
    %v1677 = vsub.s32 2, %v1676
    %v1678 = vrot.slane %v1665, %v1677
    %v1679 = vlaneseq
    %v1680 = vshrl.u32 %v1679, 7
    %v1681 = vsub.s32 3, %v1680
    %v1682 = vrot.slane %v1665, %v1681
    %v1683 = vlaneseq
    %v1684 = vshrl.u32 %v1683, 7
    %v1685 = vsub.s32 4, %v1684
    %v1686 = vrot.slane %v1665, %v1685
    %v1687 = vlaneseq
    %v1688 = vshrl.u32 %v1687, 7
    %v1689 = vsub.s32 5, %v1688
    %v1690 = vrot.slane %v1665, %v1689
    %v1691 = vlaneseq
    %v1692 = vshrl.u32 %v1691, 7
    %v1693 = vsub.s32 6, %v1692
    %v1694 = vrot.slane %v1665, %v1693
    %v1830 = vunpack.c.l.b16 %v1537
    %v1831 = vunpack.c.h.b16 %v1537
    %v1832 = vunpack.c.l.b16 %v1538
    %v1833 = vunpack.c.h.b16 %v1538
    %v1834 = vunpack.c.l.b16 %v1539
    %v1835 = vunpack.c.h.b16 %v1539
    %v1836 = vunpack.c.l.b16 %v1540
    %v1837 = vunpack.c.l.b16 %v1541
    %v1838 = vunpack.c.h.b16 %v1541
    %v1839 = vunpack.c.l.b16 %v1542
    %v1840 = vunpack.c.h.b16 %v1542
    %v1841 = vunpack.c.l.b16 %v1543
    %v1842 = vunpack.c.h.b16 %v1543
    %v1843 = vunpack.c.l.b16 %v1544
    %v1844 = vunpack.c.l.b16 %v1545
    %v1845 = vunpack.c.h.b16 %v1545
    %v1846 = vunpack.c.l.b16 %v1546
    %v1847 = vunpack.c.h.b16 %v1546
    %v1848 = vunpack.c.l.b16 %v1547
    %v1849 = vunpack.c.h.b16 %v1547
    %v1850 = vunpack.c.l.b16 %v1548
    %v1851 = vunpack.c.l.b16 %v1549
    %v1852 = vunpack.c.h.b16 %v1549
    %v1853 = vunpack.c.l.b16 %v1550
    %v1854 = vunpack.c.h.b16 %v1550
    %v1855 = vunpack.c.l.b16 %v1551
    %v1856 = vunpack.c.h.b16 %v1551
    %v1857 = vunpack.c.l.b16 %v1552
    %v1858 = vunpack.c.l.b16 %v1553
    %v1859 = vunpack.c.h.b16 %v1553
    %v1860 = vunpack.c.l.b16 %v1554
    %v1861 = vunpack.c.h.b16 %v1554
    %v1862 = vunpack.c.l.b16 %v1555
    %v1863 = vunpack.c.h.b16 %v1555
    %v1864 = vunpack.c.l.b16 %v1556
    %v1865 = vunpack.c.l.b16 %v1557
    %v1866 = vunpack.c.h.b16 %v1557
    %v1867 = vunpack.c.l.b16 %v1558
    %v1868 = vunpack.c.h.b16 %v1558
    %v1869 = vunpack.c.l.b16 %v1559
    %v1870 = vunpack.c.h.b16 %v1559
    %v1871 = vunpack.c.l.b16 %v1560
    %v1872 = vunpack.c.l.b16 %v1561
    %v1873 = vunpack.c.h.b16 %v1561
    %v1874 = vunpack.c.l.b16 %v1562
    %v1875 = vunpack.c.h.b16 %v1562
    %v1876 = vunpack.c.l.b16 %v1563
    %v1877 = vunpack.c.h.b16 %v1563
    %v1878 = vunpack.c.l.b16 %v1564
    %v1879 = vunpack.c.l.b16 %v1565
    %v1880 = vunpack.c.h.b16 %v1565
    %v1881 = vunpack.c.l.b16 %v1566
    %v1882 = vunpack.c.h.b16 %v1566
    %v1883 = vunpack.c.l.b16 %v1567
    %v1884 = vunpack.c.h.b16 %v1567
    %v1885 = vunpack.c.l.b16 %v1568
    %v1886 = vunpack.c.l.b16 %v1569
    %v1887 = vunpack.c.h.b16 %v1569
    %v1888 = vunpack.c.l.b16 %v1570
    %v1889 = vunpack.c.h.b16 %v1570
    %v1890 = vunpack.c.l.b16 %v1571
    %v1891 = vunpack.c.h.b16 %v1571
    %v1892 = vunpack.c.l.b16 %v1572
    %v1893 = vunpack.c.l.b16 %v1573
    %v1894 = vunpack.c.h.b16 %v1573
    %v1895 = vunpack.c.l.b16 %v1574
    %v1896 = vunpack.c.h.b16 %v1574
    %v1897 = vunpack.c.l.b16 %v1575
    %v1898 = vunpack.c.h.b16 %v1575
    %v1899 = vunpack.c.l.b16 %v1576
    %v1900 = vunpack.c.l.b16 %v1577
    %v1901 = vunpack.c.h.b16 %v1577
    %v1902 = vunpack.c.l.b16 %v1578
    %v1903 = vunpack.c.h.b16 %v1578
    %v1904 = vunpack.c.l.b16 %v1579
    %v1905 = vunpack.c.h.b16 %v1579
    %v1906 = vunpack.c.l.b16 %v1580
    %v1907 = vunpack.c.l.b16 %v1581
    %v1908 = vunpack.c.h.b16 %v1581
    %v1909 = vunpack.c.l.b16 %v1582
    %v1910 = vunpack.c.h.b16 %v1582
    %v1911 = vunpack.c.l.b16 %v1583
    %v1912 = vunpack.c.h.b16 %v1583
    %v1913 = vunpack.c.l.b16 %v1584
    %v1914 = vunpack.c.l.b16 %v1585
    %v1915 = vunpack.c.h.b16 %v1585
    %v1916 = vunpack.c.l.b16 %v1586
    %v1917 = vunpack.c.h.b16 %v1586
    %v1918 = vunpack.c.l.b16 %v1587
    %v1919 = vunpack.c.h.b16 %v1587
    %v1920 = vunpack.c.l.b16 %v1588
    %v1921 = vunpack.c.l.b16 %v1589
    %v1922 = vunpack.c.h.b16 %v1589
    %v1923 = vunpack.c.l.b16 %v1590
    %v1924 = vunpack.c.h.b16 %v1590
    %v1925 = vunpack.c.l.b16 %v1591
    %v1926 = vunpack.c.h.b16 %v1591
    %v1927 = vunpack.c.l.b16 %v1592
    %v1928 = vunpack.c.l.b16 %v1593
    %v1929 = vunpack.c.h.b16 %v1593
    %v1930 = vunpack.c.l.b16 %v1594
    %v1931 = vunpack.c.h.b16 %v1594
    %v1932 = vunpack.c.l.b16 %v1595
    %v1933 = vunpack.c.h.b16 %v1595
    %v1934 = vunpack.c.l.b16 %v1596
    %v1935 = vunpack.c.l.b16 %v1597
    %v1936 = vunpack.c.h.b16 %v1597
    %v1937 = vunpack.c.l.b16 %v1598
    %v1938 = vunpack.c.h.b16 %v1598
    %v1939 = vunpack.c.l.b16 %v1599
    %v1940 = vunpack.c.h.b16 %v1599
    %v1941 = vunpack.c.l.b16 %v1600
    %v1942 = vunpack.c.l.b16 %v1601
    %v1943 = vunpack.c.h.b16 %v1601
    %v1944 = vunpack.c.l.b16 %v1602
    %v1945 = vunpack.c.h.b16 %v1602
    %v1946 = vunpack.c.l.b16 %v1603
    %v1947 = vunpack.c.h.b16 %v1603
    %v1948 = vunpack.c.l.b16 %v1604
    %v1949 = vunpack.c.l.b16 %v1605
    %v1950 = vunpack.c.h.b16 %v1605
    %v1951 = vunpack.c.l.b16 %v1606
    %v1952 = vunpack.c.h.b16 %v1606
    %v1953 = vunpack.c.l.b16 %v1607
    %v1954 = vunpack.c.h.b16 %v1607
    %v1955 = vunpack.c.l.b16 %v1608
    %v1956 = vunpack.c.l.b16 %v1609
    %v1957 = vunpack.c.h.b16 %v1609
    %v1958 = vunpack.c.l.b16 %v1610
    %v1959 = vunpack.c.h.b16 %v1610
    %v1960 = vunpack.c.l.b16 %v1611
    %v1961 = vunpack.c.h.b16 %v1611
    %v1962 = vunpack.c.l.b16 %v1612
    %v1963 = vunpack.c.l.b16 %v1613
    %v1964 = vunpack.c.h.b16 %v1613
    %v1965 = vunpack.c.l.b16 %v1614
    %v1966 = vunpack.c.h.b16 %v1614
    %v1967 = vunpack.c.l.b16 %v1615
    %v1968 = vunpack.c.h.b16 %v1615
    %v1969 = vunpack.c.l.b16 %v1616
    %v1970 = vunpack.c.l.b16 %v1617
    %v1971 = vunpack.c.h.b16 %v1617
    %v1972 = vunpack.c.l.b16 %v1618
    %v1973 = vunpack.c.h.b16 %v1618
    %v1974 = vunpack.c.l.b16 %v1619
    %v1975 = vunpack.c.h.b16 %v1619
    %v1976 = vunpack.c.l.b16 %v1620
    %v1977 = vunpack.c.l.b16 %v1621
    %v1978 = vunpack.c.h.b16 %v1621
    %v1979 = vunpack.c.l.b16 %v1622
    %v1980 = vunpack.c.h.b16 %v1622
    %v1981 = vunpack.c.l.b16 %v1623
    %v1982 = vunpack.c.h.b16 %v1623
    %v1983 = vunpack.c.l.b16 %v1624
    %v1984 = vunpack.c.l.b16 %v1625
    %v1985 = vunpack.c.h.b16 %v1625
    %v1986 = vunpack.c.l.b16 %v1626
    %v1987 = vunpack.c.h.b16 %v1626
    %v1988 = vunpack.c.l.b16 %v1627
    %v1989 = vunpack.c.h.b16 %v1627
    %v1990 = vunpack.c.l.b16 %v1628
    %v1991 = vunpack.c.l.b16 %v1629
    %v1992 = vunpack.c.h.b16 %v1629
    %v1993 = vunpack.c.l.b16 %v1630
    %v1994 = vunpack.c.h.b16 %v1630
    %v1995 = vunpack.c.l.b16 %v1631
    %v1996 = vunpack.c.h.b16 %v1631
    %v1997 = vunpack.c.l.b16 %v1632
    %v1998 = vunpack.c.l.b16 %v1633
    %v1999 = vunpack.c.h.b16 %v1633
    %v2000 = vunpack.c.l.b16 %v1634
    %v2001 = vunpack.c.h.b16 %v1634
    %v2002 = vunpack.c.l.b16 %v1635
    %v2003 = vunpack.c.h.b16 %v1635
    %v2004 = vunpack.c.l.b16 %v1636
    %v2005 = vunpack.c.l.b16 %v1637
    %v2006 = vunpack.c.h.b16 %v1637
    %v2007 = vunpack.c.l.b16 %v1638
    %v2008 = vunpack.c.h.b16 %v1638
    %v2009 = vunpack.c.l.b16 %v1639
    %v2010 = vunpack.c.h.b16 %v1639
    %v2011 = vunpack.c.l.b16 %v1640
    %v2012 = vunpack.c.l.b16 %v1641
    %v2013 = vunpack.c.h.b16 %v1641
    %v2014 = vunpack.c.l.b16 %v1642
    %v2015 = vunpack.c.h.b16 %v1642
    %v2016 = vunpack.c.l.b16 %v1643
    %v2017 = vunpack.c.h.b16 %v1643
    %v2018 = vunpack.c.l.b16 %v1644
    %v2019 = vunpack.c.l.b16 %v1645
    %v2020 = vunpack.c.h.b16 %v1645
    %v2021 = vunpack.c.l.b16 %v1646
    %v2022 = vunpack.c.h.b16 %v1646
    %v2023 = vunpack.c.l.b16 %v1647
    %v2024 = vunpack.c.h.b16 %v1647
    %v2025 = vunpack.c.l.b16 %v1648
    %v2026 = vunpack.c.l.b16 %v1649
    %v2027 = vunpack.c.h.b16 %v1649
    %v2028 = vunpack.c.l.b16 %v1650
    %v2029 = vunpack.c.h.b16 %v1650
    %v2030 = vunpack.c.l.b16 %v1651
    %v2031 = vunpack.c.h.b16 %v1651
    %v2032 = vunpack.c.l.b16 %v1652
    %v2033 = vunpack.c.l.b16 %v1653
    %v2034 = vunpack.c.h.b16 %v1653
    %v2035 = vunpack.c.l.b16 %v1654
    %v2036 = vunpack.c.h.b16 %v1654
    %v2037 = vunpack.c.l.b16 %v1655
    %v2038 = vunpack.c.h.b16 %v1655
    %v2039 = vunpack.c.l.b16 %v1656
    %v2040 = vunpack.c.l.b16 %v1657
    %v2041 = vunpack.c.h.b16 %v1657
    %v2042 = vunpack.c.l.b16 %v1658
    %v2043 = vunpack.c.h.b16 %v1658
    %v2044 = vunpack.c.l.b16 %v1659
    %v2045 = vunpack.c.h.b16 %v1659
    %v2046 = vunpack.c.l.b16 %v1660
    %v2047 = vunpack.c.l.b16 %v1661
    %v2048 = vunpack.c.h.b16 %v1661
    %v2049 = vunpack.c.l.b16 %v1662
    %v2050 = vunpack.c.h.b16 %v1662
    %v2051 = vunpack.c.l.b16 %v1663
    %v2052 = vunpack.c.h.b16 %v1663
    %v2053 = vunpack.c.l.b16 %v1664
    %v2054 = vpack.c.b16 %v1837, %v1830
    %v2055 = vpack.c.b16 %v1838, %v1831
    %v2056 = vpack.c.b16 %v1839, %v1832
    %v2057 = vpack.c.b16 %v1840, %v1833
    %v2058 = vpack.c.b16 %v1841, %v1834
    %v2059 = vpack.c.b16 %v1842, %v1835
    %v2060 = vpack.c.b16 %v1843, %v1836
    %v2061 = vpack.c.b16 %v1851, %v1844
    %v2062 = vpack.c.b16 %v1852, %v1845
    %v2063 = vpack.c.b16 %v1853, %v1846
    %v2064 = vpack.c.b16 %v1854, %v1847
    %v2065 = vpack.c.b16 %v1855, %v1848
    %v2066 = vpack.c.b16 %v1856, %v1849
    %v2067 = vpack.c.b16 %v1857, %v1850
    %v2068 = vpack.c.b16 %v1865, %v1858
    %v2069 = vpack.c.b16 %v1866, %v1859
    %v2070 = vpack.c.b16 %v1867, %v1860
    %v2071 = vpack.c.b16 %v1868, %v1861
    %v2072 = vpack.c.b16 %v1869, %v1862
    %v2073 = vpack.c.b16 %v1870, %v1863
    %v2074 = vpack.c.b16 %v1871, %v1864
    %v2075 = vpack.c.b16 %v1879, %v1872
    %v2076 = vpack.c.b16 %v1880, %v1873
    %v2077 = vpack.c.b16 %v1881, %v1874
    %v2078 = vpack.c.b16 %v1882, %v1875
    %v2079 = vpack.c.b16 %v1883, %v1876
    %v2080 = vpack.c.b16 %v1884, %v1877
    %v2081 = vpack.c.b16 %v1885, %v1878
    %v2082 = vpack.c.b16 %v1893, %v1886
    %v2083 = vpack.c.b16 %v1894, %v1887
    %v2084 = vpack.c.b16 %v1895, %v1888
    %v2085 = vpack.c.b16 %v1896, %v1889
    %v2086 = vpack.c.b16 %v1897, %v1890
    %v2087 = vpack.c.b16 %v1898, %v1891
    %v2088 = vpack.c.b16 %v1899, %v1892
    %v2089 = vpack.c.b16 %v1907, %v1900
    %v2090 = vpack.c.b16 %v1908, %v1901
    %v2091 = vpack.c.b16 %v1909, %v1902
    %v2092 = vpack.c.b16 %v1910, %v1903
    %v2093 = vpack.c.b16 %v1911, %v1904
    %v2094 = vpack.c.b16 %v1912, %v1905
    %v2095 = vpack.c.b16 %v1913, %v1906
    %v2096 = vpack.c.b16 %v1921, %v1914
    %v2097 = vpack.c.b16 %v1922, %v1915
    %v2098 = vpack.c.b16 %v1923, %v1916
    %v2099 = vpack.c.b16 %v1924, %v1917
    %v2100 = vpack.c.b16 %v1925, %v1918
    %v2101 = vpack.c.b16 %v1926, %v1919
    %v2102 = vpack.c.b16 %v1927, %v1920
    %v2103 = vpack.c.b16 %v1935, %v1928
    %v2104 = vpack.c.b16 %v1936, %v1929
    %v2105 = vpack.c.b16 %v1937, %v1930
    %v2106 = vpack.c.b16 %v1938, %v1931
    %v2107 = vpack.c.b16 %v1939, %v1932
    %v2108 = vpack.c.b16 %v1940, %v1933
    %v2109 = vpack.c.b16 %v1941, %v1934
    %v2110 = vpack.c.b16 %v1949, %v1942
    %v2111 = vpack.c.b16 %v1950, %v1943
    %v2112 = vpack.c.b16 %v1951, %v1944
    %v2113 = vpack.c.b16 %v1952, %v1945
    %v2114 = vpack.c.b16 %v1953, %v1946
    %v2115 = vpack.c.b16 %v1954, %v1947
    %v2116 = vpack.c.b16 %v1955, %v1948
    %v2117 = vpack.c.b16 %v1963, %v1956
    %v2118 = vpack.c.b16 %v1964, %v1957
    %v2119 = vpack.c.b16 %v1965, %v1958
    %v2120 = vpack.c.b16 %v1966, %v1959
    %v2121 = vpack.c.b16 %v1967, %v1960
    %v2122 = vpack.c.b16 %v1968, %v1961
    %v2123 = vpack.c.b16 %v1969, %v1962
    %v2124 = vpack.c.b16 %v1977, %v1970
    %v2125 = vpack.c.b16 %v1978, %v1971
    %v2126 = vpack.c.b16 %v1979, %v1972
    %v2127 = vpack.c.b16 %v1980, %v1973
    %v2128 = vpack.c.b16 %v1981, %v1974
    %v2129 = vpack.c.b16 %v1982, %v1975
    %v2130 = vpack.c.b16 %v1983, %v1976
    %v2131 = vpack.c.b16 %v1991, %v1984
    %v2132 = vpack.c.b16 %v1992, %v1985
    %v2133 = vpack.c.b16 %v1993, %v1986
    %v2134 = vpack.c.b16 %v1994, %v1987
    %v2135 = vpack.c.b16 %v1995, %v1988
    %v2136 = vpack.c.b16 %v1996, %v1989
    %v2137 = vpack.c.b16 %v1997, %v1990
    %v2138 = vpack.c.b16 %v2005, %v1998
    %v2139 = vpack.c.b16 %v2006, %v1999
    %v2140 = vpack.c.b16 %v2007, %v2000
    %v2141 = vpack.c.b16 %v2008, %v2001
    %v2142 = vpack.c.b16 %v2009, %v2002
    %v2143 = vpack.c.b16 %v2010, %v2003
    %v2144 = vpack.c.b16 %v2011, %v2004
    %v2145 = vpack.c.b16 %v2019, %v2012
    %v2146 = vpack.c.b16 %v2020, %v2013
    %v2147 = vpack.c.b16 %v2021, %v2014
    %v2148 = vpack.c.b16 %v2022, %v2015
    %v2149 = vpack.c.b16 %v2023, %v2016
    %v2150 = vpack.c.b16 %v2024, %v2017
    %v2151 = vpack.c.b16 %v2025, %v2018
    %v2152 = vpack.c.b16 %v2033, %v2026
    %v2153 = vpack.c.b16 %v2034, %v2027
    %v2154 = vpack.c.b16 %v2035, %v2028
    %v2155 = vpack.c.b16 %v2036, %v2029
    %v2156 = vpack.c.b16 %v2037, %v2030
    %v2157 = vpack.c.b16 %v2038, %v2031
    %v2158 = vpack.c.b16 %v2039, %v2032
    %v2159 = vpack.c.b16 %v2047, %v2040
    %v2160 = vpack.c.b16 %v2048, %v2041
    %v2161 = vpack.c.b16 %v2049, %v2042
    %v2162 = vpack.c.b16 %v2050, %v2043
    %v2163 = vpack.c.b16 %v2051, %v2044
    %v2164 = vpack.c.b16 %v2052, %v2045
    %v2165 = vpack.c.b16 %v2053, %v2046
    %2278 = vmatprep.subr.bf16.mxu0 %v2055
    %2279 = vmatpush1.bf16.msra.mxu0 %v2054
    %2280 = vmatprep.subr.bf16.mxu0 %v2062
    %2281 = vmatpush1.bf16.msra.mxu0 %v2061
    %2282 = vmatprep.subr.bf16.mxu0 %v2069
    %2283 = vmatpush1.bf16.msra.mxu0 %v2068
    %2284 = vmatprep.subr.bf16.mxu0 %v2076
    %2285 = vmatpush1.bf16.msra.mxu0 %v2075
    %2286 = vmatprep.subr.bf16.mxu0 %v2083
    %2287 = vmatpush1.bf16.msra.mxu0 %v2082
    %2288 = vmatprep.subr.bf16.mxu0 %v2090
    %2289 = vmatpush1.bf16.msra.mxu0 %v2089
    %2290 = vmatprep.subr.bf16.mxu0 %v2097
    %2291 = vmatpush1.bf16.msra.mxu0 %v2096
    %2292 = vmatprep.subr.bf16.mxu0 %v2104
    %2293 = vmatpush1.bf16.msra.mxu0 %v2103
    %2294 = vmatprep.subr.bf16.mxu0 %v2111
    %2295 = vmatpush1.bf16.msra.mxu0 %v2110
    %2296 = vmatprep.subr.bf16.mxu0 %v2118
    %2297 = vmatpush1.bf16.msra.mxu0 %v2117
    %2298 = vmatprep.subr.bf16.mxu0 %v2125
    %2299 = vmatpush1.bf16.msra.mxu0 %v2124
    %2300 = vmatprep.subr.bf16.mxu0 %v2132
    %2301 = vmatpush1.bf16.msra.mxu0 %v2131
    %2302 = vmatprep.subr.bf16.mxu0 %v2139
    %2303 = vmatpush1.bf16.msra.mxu0 %v2138
    %2304 = vmatprep.subr.bf16.mxu0 %v2146
    %2305 = vmatpush1.bf16.msra.mxu0 %v2145
    %2306 = vmatprep.subr.bf16.mxu0 %v2153
    %2307 = vmatpush1.bf16.msra.mxu0 %v2152
    %2308 = vmatprep.subr.bf16.mxu0 %v2160
    %2309 = vmatpush1.bf16.msra.mxu0 %v2159
    %2310 = vmatprep.mubr.bf16.mxu0 %v1536
    %2311 = vmatmul.mubr.bf16.gmra.mrb[0].mxu0 %v1535
    %v2312 = vpop.f32.mrb[0].mxu0
    %v2313 = vadd.f32 %v1670, %v2312
    %v2314 = vpop.f32.mrb[0].mxu0
    %v2315 = vadd.f32 %v1674, %v2314
    %v2316 = vpop.f32.mrb[0].mxu0
    %v2317 = vadd.f32 %v1670, %v2316
    %v2318 = vpop.f32.mrb[0].mxu0
    %v2319 = vadd.f32 %v1674, %v2318
    %2320 = vdwg.mxu0
    %2321 = vmatprep.subr.bf16.mxu0 %v2057
    %2322 = vmatpush1.bf16.msra.mxu0 %v2056
    %2323 = vmatprep.subr.bf16.mxu0 %v2064
    %2324 = vmatpush1.bf16.msra.mxu0 %v2063
    %2325 = vmatprep.subr.bf16.mxu0 %v2071
    %2326 = vmatpush1.bf16.msra.mxu0 %v2070
    %2327 = vmatprep.subr.bf16.mxu0 %v2078
    %2328 = vmatpush1.bf16.msra.mxu0 %v2077
    %2329 = vmatprep.subr.bf16.mxu0 %v2085
    %2330 = vmatpush1.bf16.msra.mxu0 %v2084
    %2331 = vmatprep.subr.bf16.mxu0 %v2092
    %2332 = vmatpush1.bf16.msra.mxu0 %v2091
    %2333 = vmatprep.subr.bf16.mxu0 %v2099
    %2334 = vmatpush1.bf16.msra.mxu0 %v2098
    %2335 = vmatprep.subr.bf16.mxu0 %v2106
    %2336 = vmatpush1.bf16.msra.mxu0 %v2105
    %2337 = vmatprep.subr.bf16.mxu0 %v2113
    %2338 = vmatpush1.bf16.msra.mxu0 %v2112
    %2339 = vmatprep.subr.bf16.mxu0 %v2120
    %2340 = vmatpush1.bf16.msra.mxu0 %v2119
    %2341 = vmatprep.subr.bf16.mxu0 %v2127
    %2342 = vmatpush1.bf16.msra.mxu0 %v2126
    %2343 = vmatprep.subr.bf16.mxu0 %v2134
    %2344 = vmatpush1.bf16.msra.mxu0 %v2133
    %2345 = vmatprep.subr.bf16.mxu0 %v2141
    %2346 = vmatpush1.bf16.msra.mxu0 %v2140
    %2347 = vmatprep.subr.bf16.mxu0 %v2148
    %2348 = vmatpush1.bf16.msra.mxu0 %v2147
    %2349 = vmatprep.subr.bf16.mxu0 %v2155
    %2350 = vmatpush1.bf16.msra.mxu0 %v2154
    %2351 = vmatprep.subr.bf16.mxu0 %v2162
    %2352 = vmatpush1.bf16.msra.mxu0 %v2161
    %2353 = vmatprep.mubr.bf16.mxu0 %v1536
    %2354 = vmatmul.mubr.bf16.gmra.mrb[0].mxu0 %v1535
    %v2355 = vpop.f32.mrb[0].mxu0
    %v2356 = vadd.f32 %v1678, %v2355
    %v2357 = vpop.f32.mrb[0].mxu0
    %v2358 = vadd.f32 %v1682, %v2357
    %v2359 = vpop.f32.mrb[0].mxu0
    %v2360 = vadd.f32 %v1678, %v2359
    %v2361 = vpop.f32.mrb[0].mxu0
    %v2362 = vadd.f32 %v1682, %v2361
    %2363 = vdwg.mxu0
    %2364 = vmatprep.subr.bf16.mxu0 %v2059
    %2365 = vmatpush1.bf16.msra.mxu0 %v2058
    %2366 = vmatprep.subr.bf16.mxu0 %v2066
    %2367 = vmatpush1.bf16.msra.mxu0 %v2065
    %2368 = vmatprep.subr.bf16.mxu0 %v2073
    %2369 = vmatpush1.bf16.msra.mxu0 %v2072
    %2370 = vmatprep.subr.bf16.mxu0 %v2080
    %2371 = vmatpush1.bf16.msra.mxu0 %v2079
    %2372 = vmatprep.subr.bf16.mxu0 %v2087
    %2373 = vmatpush1.bf16.msra.mxu0 %v2086
    %2374 = vmatprep.subr.bf16.mxu0 %v2094
    %2375 = vmatpush1.bf16.msra.mxu0 %v2093
    %2376 = vmatprep.subr.bf16.mxu0 %v2101
    %2377 = vmatpush1.bf16.msra.mxu0 %v2100
    %2378 = vmatprep.subr.bf16.mxu0 %v2108
    %2379 = vmatpush1.bf16.msra.mxu0 %v2107
    %2380 = vmatprep.subr.bf16.mxu0 %v2115
    %2381 = vmatpush1.bf16.msra.mxu0 %v2114
    %2382 = vmatprep.subr.bf16.mxu0 %v2122
    %2383 = vmatpush1.bf16.msra.mxu0 %v2121
    %2384 = vmatprep.subr.bf16.mxu0 %v2129
    %2385 = vmatpush1.bf16.msra.mxu0 %v2128
    %2386 = vmatprep.subr.bf16.mxu0 %v2136
    %2387 = vmatpush1.bf16.msra.mxu0 %v2135
    %2388 = vmatprep.subr.bf16.mxu0 %v2143
    %2389 = vmatpush1.bf16.msra.mxu0 %v2142
    %2390 = vmatprep.subr.bf16.mxu0 %v2150
    %2391 = vmatpush1.bf16.msra.mxu0 %v2149
    %2392 = vmatprep.subr.bf16.mxu0 %v2157
    %2393 = vmatpush1.bf16.msra.mxu0 %v2156
    %2394 = vmatprep.subr.bf16.mxu0 %v2164
    %2395 = vmatpush1.bf16.msra.mxu0 %v2163
    %2396 = vmatprep.mubr.bf16.mxu0 %v1536
    %2397 = vmatmul.mubr.bf16.gmra.mrb[0].mxu0 %v1535
    %v2398 = vpop.f32.mrb[0].mxu0
    %v2399 = vadd.f32 %v1686, %v2398
    %v2400 = vpop.f32.mrb[0].mxu0
    %v2401 = vadd.f32 %v1690, %v2400
    %v2402 = vpop.f32.mrb[0].mxu0
    %v2403 = vadd.f32 %v1686, %v2402
    %v2404 = vpop.f32.mrb[0].mxu0
    %v2405 = vadd.f32 %v1690, %v2404
    %2406 = vdwg.mxu0
    %2407 = vmatprep.subr.bf16.mxu0 0
    %2408 = vmatpush1.bf16.msra.mxu0 %v2060
    %2409 = vmatprep.subr.bf16.mxu0 0
    %2410 = vmatpush1.bf16.msra.mxu0 %v2067
    %2411 = vmatprep.subr.bf16.mxu0 0
    %2412 = vmatpush1.bf16.msra.mxu0 %v2074
    %2413 = vmatprep.subr.bf16.mxu0 0
    %2414 = vmatpush1.bf16.msra.mxu0 %v2081
    %2415 = vmatprep.subr.bf16.mxu0 0
    %2416 = vmatpush1.bf16.msra.mxu0 %v2088
    %2417 = vmatprep.subr.bf16.mxu0 0
    %2418 = vmatpush1.bf16.msra.mxu0 %v2095
    %2419 = vmatprep.subr.bf16.mxu0 0
    %2420 = vmatpush1.bf16.msra.mxu0 %v2102
    %2421 = vmatprep.subr.bf16.mxu0 0
    %2422 = vmatpush1.bf16.msra.mxu0 %v2109
    %2423 = vmatprep.subr.bf16.mxu0 0
    %2424 = vmatpush1.bf16.msra.mxu0 %v2116
    %2425 = vmatprep.subr.bf16.mxu0 0
    %2426 = vmatpush1.bf16.msra.mxu0 %v2123
    %2427 = vmatprep.subr.bf16.mxu0 0
    %2428 = vmatpush1.bf16.msra.mxu0 %v2130
    %2429 = vmatprep.subr.bf16.mxu0 0
    %2430 = vmatpush1.bf16.msra.mxu0 %v2137
    %2431 = vmatprep.subr.bf16.mxu0 0
    %2432 = vmatpush1.bf16.msra.mxu0 %v2144
    %2433 = vmatprep.subr.bf16.mxu0 0
    %2434 = vmatpush1.bf16.msra.mxu0 %v2151
    %2435 = vmatprep.subr.bf16.mxu0 0
    %2436 = vmatpush1.bf16.msra.mxu0 %v2158
    %2437 = vmatprep.subr.bf16.mxu0 0
    %2438 = vmatpush1.bf16.msra.mxu0 %v2165
    %2439 = vmatprep.mubr.bf16.mxu0 %v1536
    %2440 = vmatmul.mubr.bf16.gmra.mrb[0].mxu0 %v1535
    %v2441 = vpop.f32.mrb[0].mxu0
    %v2442 = vadd.f32 %v1694, %v2441
    %v2443 = vpop.f32.mrb[0].mxu0
    %v2444 = vpop.f32.mrb[0].mxu0
    %v2445 = vadd.f32 %v1694, %v2444
    %v2446 = vpop.f32.mrb[0].mxu0
    %2447 = vdwg.mxu0
    %v2448 = vxor.u32 %v2313, 2147483648
    %v2449 = vxor.u32 %v2315, 2147483648
    %v2450 = vxor.u32 %v2356, 2147483648
    %v2451 = vxor.u32 %v2358, 2147483648
    %v2452 = vxor.u32 %v2399, 2147483648
    %v2453 = vxor.u32 %v2401, 2147483648
    %v2454 = vxor.u32 %v2442, 2147483648
    %v2455 = vxor.u32 %v2317, 2147483648
    %v2456 = vxor.u32 %v2319, 2147483648
    %v2457 = vxor.u32 %v2360, 2147483648
    %v2458 = vxor.u32 %v2362, 2147483648
    %v2459 = vxor.u32 %v2403, 2147483648
    %v2460 = vxor.u32 %v2405, 2147483648
    %v2461 = vxor.u32 %v2445, 2147483648
    %v2462 = vmul.f32 %v2448, 1.442695
    %v2463 = vpow.pop %v2462
    %v2464 = vmul.f32 %v2449, 1.442695
    %v2465 = vpow.pop %v2464
    %v2466 = vmul.f32 %v2450, 1.442695
    %v2467 = vpow.pop %v2466
    %v2468 = vmul.f32 %v2451, 1.442695
    %v2469 = vpow.pop %v2468
    %v2470 = vmul.f32 %v2452, 1.442695
    %v2471 = vpow.pop %v2470
    %v2472 = vmul.f32 %v2453, 1.442695
    %v2473 = vpow.pop %v2472
    %v2474 = vmul.f32 %v2454, 1.442695
    %v2475 = vpow.pop %v2474
    %v2476 = vmul.f32 %v2455, 1.442695
    %v2477 = vpow.pop %v2476
    %v2478 = vmul.f32 %v2456, 1.442695
    %v2479 = vpow.pop %v2478
    %v2480 = vmul.f32 %v2457, 1.442695
    %v2481 = vpow.pop %v2480
    %v2482 = vmul.f32 %v2458, 1.442695
    %v2483 = vpow.pop %v2482
    %v2484 = vmul.f32 %v2459, 1.442695
    %v2485 = vpow.pop %v2484
    %v2486 = vmul.f32 %v2460, 1.442695
    %v2487 = vpow.pop %v2486
    %v2488 = vmul.f32 %v2461, 1.442695
    %v2489 = vpow.pop %v2488
    %v2490 = vadd.f32 %v2463, 1.0
    %v2491 = vadd.f32 %v2465, 1.0
    %v2492 = vadd.f32 %v2467, 1.0
    %v2493 = vadd.f32 %v2469, 1.0
    %v2494 = vadd.f32 %v2471, 1.0
    %v2495 = vadd.f32 %v2473, 1.0
    %v2496 = vadd.f32 %v2475, 1.0
    %v2497 = vadd.f32 %v2477, 1.0
    %v2498 = vadd.f32 %v2479, 1.0
    %v2499 = vadd.f32 %v2481, 1.0
    %v2500 = vadd.f32 %v2483, 1.0
    %v2501 = vadd.f32 %v2485, 1.0
    %v2502 = vadd.f32 %v2487, 1.0
    %v2503 = vadd.f32 %v2489, 1.0
    %v2504 = vrcp.pop %v2490
    %v2505 = vmul.f32 1.0, %v2504
    %v2506 = vrcp.pop %v2491
    %v2507 = vmul.f32 1.0, %v2506
    %v2508 = vrcp.pop %v2492
    %v2509 = vmul.f32 1.0, %v2508
    %v2510 = vrcp.pop %v2493
    %v2511 = vmul.f32 1.0, %v2510
    %v2512 = vrcp.pop %v2494
    %v2513 = vmul.f32 1.0, %v2512
    %v2514 = vrcp.pop %v2495
    %v2515 = vmul.f32 1.0, %v2514
    %v2516 = vrcp.pop %v2496
    %v2517 = vmul.f32 1.0, %v2516
    %v2518 = vrcp.pop %v2497
    %v2519 = vmul.f32 1.0, %v2518
    %v2520 = vrcp.pop %v2498
    %v2521 = vmul.f32 1.0, %v2520
    %v2522 = vrcp.pop %v2499
    %v2523 = vmul.f32 1.0, %v2522
    %v2524 = vrcp.pop %v2500
    %v2525 = vmul.f32 1.0, %v2524
    %v2526 = vrcp.pop %v2501
    %v2527 = vmul.f32 1.0, %v2526
    %v2528 = vrcp.pop %v2502
    %v2529 = vmul.f32 1.0, %v2528
    %v2530 = vrcp.pop %v2503
    %v2531 = vmul.f32 1.0, %v2530
    %v2546 = vcombine.low %v2505, %v2507
    %v2547 = vcombine.high %v2505, %v2507
    %v2548 = vcombine.low %v2509, %v2511
    %v2549 = vcombine.high %v2509, %v2511
    %v2551 = vunpack.c.l.s4 1983009808
    %v2552 = vunpack.c.0.s8 %v2551
    %v2553 = vlaneseq
    %v2554 = vshrl.u32 %v2553, 7
    %v2555 = vsub.s32 %v2552, %v2554
    %v2556 = vrot.slane %v2546, %v2555
    %v2558 = vunpack.c.l.s4 1983009808
    %v2559 = vunpack.c.0.s8 %v2558
    %v2560 = vlaneseq
    %v2561 = vshrl.u32 %v2560, 7
    %v2562 = vsub.s32 %v2559, %v2561
    %v2563 = vrot.slane %v2547, %v2562
    %v2565 = vunpack.c.l.s4 1983009808
    %v2566 = vunpack.c.0.s8 %v2565
    %v2567 = vlaneseq
    %v2568 = vshrl.u32 %v2567, 7
    %v2569 = vsub.s32 %v2566, %v2568
    %v2570 = vrot.slane %v2548, %v2569
    %v2572 = vunpack.c.l.s4 1983009808
    %v2573 = vunpack.c.0.s8 %v2572
    %v2574 = vlaneseq
    %v2575 = vshrl.u32 %v2574, 7
    %v2576 = vsub.s32 %v2573, %v2575
    %v2577 = vrot.slane %v2549, %v2576
    %v2578 = vcombine.low %v2556, %v2570
    %v2579 = vcombine.high %v2556, %v2570
    %v2580 = vcombine.low %v2563, %v2577
    %v2581 = vcombine.high %v2563, %v2577
    %v2582 = vcombine.low %v2513, %v2515
    %v2583 = vcombine.high %v2513, %v2515
    %v2584 = vcombine.high %v2517, %v2517
    %v2586 = vunpack.c.l.s4 1983009808
    %v2587 = vunpack.c.0.s8 %v2586
    %v2588 = vlaneseq
    %v2589 = vshrl.u32 %v2588, 7
    %v2590 = vsub.s32 %v2587, %v2589
    %v2591 = vrot.slane %v2582, %v2590
    %v2593 = vunpack.c.l.s4 1983009808
    %v2594 = vunpack.c.0.s8 %v2593
    %v2595 = vlaneseq
    %v2596 = vshrl.u32 %v2595, 7
    %v2597 = vsub.s32 %v2594, %v2596
    %v2598 = vrot.slane %v2583, %v2597
    %v2600 = vunpack.c.l.s4 1983009808
    %v2601 = vunpack.c.0.s8 %v2600
    %v2602 = vlaneseq
    %v2603 = vshrl.u32 %v2602, 7
    %v2604 = vsub.s32 %v2601, %v2603
    %v2605 = vrot.slane %v2517, %v2604
    %v2607 = vunpack.c.l.s4 1983009808
    %v2608 = vunpack.c.0.s8 %v2607
    %v2609 = vlaneseq
    %v2610 = vshrl.u32 %v2609, 7
    %v2611 = vsub.s32 %v2608, %v2610
    %v2612 = vrot.slane %v2584, %v2611
    %v2613 = vcombine.low %v2591, %v2605
    %v2614 = vcombine.high %v2591, %v2605
    %v2615 = vcombine.low %v2598, %v2612
    %v2616 = vcombine.high %v2598, %v2612
    %v2617 = vcombine.low %v2519, %v2521
    %v2618 = vcombine.high %v2519, %v2521
    %v2619 = vcombine.low %v2523, %v2525
    %v2620 = vcombine.high %v2523, %v2525
    %v2622 = vunpack.c.l.s4 1983009808
    %v2623 = vunpack.c.0.s8 %v2622
    %v2624 = vlaneseq
    %v2625 = vshrl.u32 %v2624, 7
    %v2626 = vsub.s32 %v2623, %v2625
    %v2627 = vrot.slane %v2617, %v2626
    %v2629 = vunpack.c.l.s4 1983009808
    %v2630 = vunpack.c.0.s8 %v2629
    %v2631 = vlaneseq
    %v2632 = vshrl.u32 %v2631, 7
    %v2633 = vsub.s32 %v2630, %v2632
    %v2634 = vrot.slane %v2618, %v2633
    %v2636 = vunpack.c.l.s4 1983009808
    %v2637 = vunpack.c.0.s8 %v2636
    %v2638 = vlaneseq
    %v2639 = vshrl.u32 %v2638, 7
    %v2640 = vsub.s32 %v2637, %v2639
    %v2641 = vrot.slane %v2619, %v2640
    %v2643 = vunpack.c.l.s4 1983009808
    %v2644 = vunpack.c.0.s8 %v2643
    %v2645 = vlaneseq
    %v2646 = vshrl.u32 %v2645, 7
    %v2647 = vsub.s32 %v2644, %v2646
    %v2648 = vrot.slane %v2620, %v2647
    %v2649 = vcombine.low %v2627, %v2641
    %v2650 = vcombine.high %v2627, %v2641
    %v2651 = vcombine.low %v2634, %v2648
    %v2652 = vcombine.high %v2634, %v2648
    %v2653 = vcombine.low %v2527, %v2529
    %v2654 = vcombine.high %v2527, %v2529
    %v2655 = vcombine.high %v2531, %v2531
    %v2657 = vunpack.c.l.s4 1983009808
    %v2658 = vunpack.c.0.s8 %v2657
    %v2659 = vlaneseq
    %v2660 = vshrl.u32 %v2659, 7
    %v2661 = vsub.s32 %v2658, %v2660
    %v2662 = vrot.slane %v2653, %v2661
    %v2664 = vunpack.c.l.s4 1983009808
    %v2665 = vunpack.c.0.s8 %v2664
    %v2666 = vlaneseq
    %v2667 = vshrl.u32 %v2666, 7
    %v2668 = vsub.s32 %v2665, %v2667
    %v2669 = vrot.slane %v2654, %v2668
    %v2671 = vunpack.c.l.s4 1983009808
    %v2672 = vunpack.c.0.s8 %v2671
    %v2673 = vlaneseq
    %v2674 = vshrl.u32 %v2673, 7
    %v2675 = vsub.s32 %v2672, %v2674
    %v2676 = vrot.slane %v2531, %v2675
    %v2678 = vunpack.c.l.s4 1983009808
    %v2679 = vunpack.c.0.s8 %v2678
    %v2680 = vlaneseq
    %v2681 = vshrl.u32 %v2680, 7
    %v2682 = vsub.s32 %v2679, %v2681
    %v2683 = vrot.slane %v2655, %v2682
    %v2684 = vcombine.low %v2662, %v2676
    %v2685 = vcombine.high %v2662, %v2676
    %v2686 = vcombine.low %v2669, %v2683
    %v2687 = vcombine.high %v2669, %v2683
    %2704 = vst [vmem:[#allocation3] sm:$0xff] %v2578
    %vm2705 = vcmask 1043458
    %vm2706 = vmor %vm2705, %vm1332
    %vm2707 = vcmask 128004
    %vm2708 = vmor %vm2707, %vm2706
    %2709 = vst.msk [vmem:[#allocation3 + $0x8] sm:$0x3f] %vm2708, %v2613
    %2710 = vst [vmem:[#allocation3 + $0xe] sm:$0xff] %v2579
    %2711 = vst.msk [vmem:[#allocation3 + $0x16] sm:$0x3f] %vm2708, %v2614
    %2712 = vst [vmem:[#allocation3 + $0x1c] sm:$0xff] %v2580
    %2713 = vst.msk [vmem:[#allocation3 + $0x24] sm:$0x3f] %vm2708, %v2615
    %2714 = vst [vmem:[#allocation3 + $0x2a] sm:$0xff] %v2581
    %2715 = vst.msk [vmem:[#allocation3 + $0x32] sm:$0x3f] %vm2708, %v2616
    %2716 = vst [vmem:[#allocation3 + $0x38] sm:$0xff] %v2649
    %2717 = vst.msk [vmem:[#allocation3 + $0x40] sm:$0x3f] %vm2708, %v2684
    %2718 = vst [vmem:[#allocation3 + $0x46] sm:$0xff] %v2650
    %2719 = vst.msk [vmem:[#allocation3 + $0x4e] sm:$0x3f] %vm2708, %v2685
    %2720 = vst [vmem:[#allocation3 + $0x54] sm:$0xff] %v2651
    %2721 = vst.msk [vmem:[#allocation3 + $0x5c] sm:$0x3f] %vm2708, %v2686
    %2722 = vst [vmem:[#allocation3 + $0x62] sm:$0xff] %v2652
    %2723 = vst.msk [vmem:[#allocation3 + $0x6a] sm:$0x3f] %vm2708, %v2687
    // Predicated region
    $region58: #{vae_dense_forward.1} parent=1 // pred_check
      _
    $region59: #{vae_dense_forward.1} parent=1 // pred_check_branch
      %2725 = sbr.rel (0) target = $region61
    $region60: #{vae_dense_forward.1} parent=1 // pred_region
      // Predicated region
      $region62: #{vae_dense_forward.1} parent=60 // pred_check
        _
      $region63: #{vae_dense_forward.1} parent=60 // pred_check_branch
        %2727 = sbr.rel (0) target = $region65
      $region64: #{vae_dense_forward.1} parent=60 // pred_region
        // Predicated region
        $region66: #{vae_dense_forward.1} parent=64 // pred_check
          _
        $region67: #{vae_dense_forward.1} parent=64 // pred_check_branch
          %2729 = sbr.rel target = $region69
        $region68: #{vae_dense_forward.1} parent=64 // pred_region
          // Predicated region
          $region81: #{vae_dense_forward.1} parent=68 // pred_check
            _
          $region82: #{vae_dense_forward.1} parent=68 // pred_check_branch
            %2744 = sbr.rel (0) target = $region84
          $region83: #{vae_dense_forward.1} parent=68 // pred_region
            loop: start=0, step=1, limit=1
            $region85: #{vae_dense_forward.1} parent=83 // loop_pre_header
              _
            $region86: #{vae_dense_forward.1} parent=83 // loop_header
              %s2747 = sphi 0, %s2751
              %p2748 = scmp.ge.s32.totalorder %s2747, 1
              %s2752 = sphi [#allocation2], [#allocation2]
              %s2753 = sphi %s14, %s14
            $region87: #{vae_dense_forward.1} parent=83 // loop_header_branch
              %2750 = sbr.rel (%p2748) target = $region91
            $region88: #{vae_dense_forward.1} parent=83 // loop_body
              %v2754 = vld [vmem:[%s2752] sm:$0x3]
              %2755 = vst [vmem:[%s2753] sm:$0x3] %v2754
            $region89: #{vae_dense_forward.1} parent=83 // loop_footer
              %s2751 = sadd.s32 1, %s2747
            $region90: #{vae_dense_forward.1} parent=83 // loop_footer_branch
              %2746 = sbr.rel target = $region86
            $region91: #{vae_dense_forward.1} parent=83 // loop_exit
              _
          $region84: #{vae_dense_forward.1} parent=68 // pred_fallthru
            _
        $region69: #{vae_dense_forward.1} parent=64 // pred_fallthru
          _
        // Predicated region
        $region70: #{vae_dense_forward.1} parent=64 // pred_check
          _
        $region71: #{vae_dense_forward.1} parent=64 // pred_check_branch
          %2731 = sbr.rel (0) target = $region73
        $region72: #{vae_dense_forward.1} parent=64 // pred_region
          loop: start=0, step=1, limit=1
          $region74: #{vae_dense_forward.1} parent=72 // loop_pre_header
            _
          $region75: #{vae_dense_forward.1} parent=72 // loop_header
            %s2734 = sphi 0, %s2738
            %p2735 = scmp.ge.s32.totalorder %s2734, 1
            %s2739 = sphi [#allocation2], [#allocation2]
            %s2740 = sphi %s14, %s14
          $region76: #{vae_dense_forward.1} parent=72 // loop_header_branch
            %2737 = sbr.rel (%p2735) target = $region80
          $region77: #{vae_dense_forward.1} parent=72 // loop_body
            %v2741 = vld [vmem:[%s2739] sm:$0x3]
            %2742 = vst [vmem:[%s2740] sm:$0x3] %v2741
          $region78: #{vae_dense_forward.1} parent=72 // loop_footer
            %s2738 = sadd.s32 1, %s2734
          $region79: #{vae_dense_forward.1} parent=72 // loop_footer_branch
            %2733 = sbr.rel target = $region75
          $region80: #{vae_dense_forward.1} parent=72 // loop_exit
            _
        $region73: #{vae_dense_forward.1} parent=64 // pred_fallthru
          _
      $region65: #{vae_dense_forward.1} parent=60 // pred_fallthru
        _
      %2756 = vnop
    $region61: #{vae_dense_forward.1} parent=1 // pred_fallthru
      _
    // Predicated region
    $region92: #{vae_dense_forward.1} parent=1 // pred_check
      _
    $region93: #{vae_dense_forward.1} parent=1 // pred_check_branch
      %2758 = sbr.rel (0) target = $region95
    $region94: #{vae_dense_forward.1} parent=1 // pred_region
      // Predicated region
      $region96: #{vae_dense_forward.1} parent=94 // pred_check
        _
      $region97: #{vae_dense_forward.1} parent=94 // pred_check_branch
        %2760 = sbr.rel (0) target = $region99
      $region98: #{vae_dense_forward.1} parent=94 // pred_region
        // Predicated region
        $region100: #{vae_dense_forward.1} parent=98 // pred_check
          _
        $region101: #{vae_dense_forward.1} parent=98 // pred_check_branch
          %2762 = sbr.rel (0) target = $region103
        $region102: #{vae_dense_forward.1} parent=98 // pred_region
          %s2763 = scalar_lea.vmem [#allocation3], 8
          %s2764 = scalar_lea.vmem %s15, 8
          loop: start=0, step=1, limit=1
          $region104: #{vae_dense_forward.1} parent=102 // loop_pre_header
            _
          $region105: #{vae_dense_forward.1} parent=102 // loop_header
            %s2766 = sphi 0, %s2770
            %p2767 = scmp.ge.s32.totalorder %s2766, 1
            %s2771 = sphi [#allocation3], [#allocation3]
            %s2772 = sphi %s15, %s15
          $region106: #{vae_dense_forward.1} parent=102 // loop_header_branch
            %2769 = sbr.rel (%p2767) target = $region110
          $region107: #{vae_dense_forward.1} parent=102 // loop_body
            %v2773 = vld [vmem:[%s2771] sm:$0xff]
            %2774 = vst [vmem:[%s2772] sm:$0xff] %v2773
          $region108: #{vae_dense_forward.1} parent=102 // loop_footer
            %s2770 = sadd.s32 1, %s2766
          $region109: #{vae_dense_forward.1} parent=102 // loop_footer_branch
            %2765 = sbr.rel target = $region105
          $region110: #{vae_dense_forward.1} parent=102 // loop_exit
            _
          loop: start=0, step=1, limit=1
          $region111: #{vae_dense_forward.1} parent=102 // loop_pre_header
            _
          $region112: #{vae_dense_forward.1} parent=102 // loop_header
            %s2777 = sphi 0, %s2781
            %p2778 = scmp.ge.s32.totalorder %s2777, 1
            %s2782 = sphi %s2763, %s2763
            %s2783 = sphi %s2764, %s2764
          $region113: #{vae_dense_forward.1} parent=102 // loop_header_branch
            %2780 = sbr.rel (%p2778) target = $region117
          $region114: #{vae_dense_forward.1} parent=102 // loop_body
            %v2784 = vld [vmem:[%s2782] sm:$0x3f]
            %2785 = vst [vmem:[%s2783] sm:$0x3f] %v2784
          $region115: #{vae_dense_forward.1} parent=102 // loop_footer
            %s2781 = sadd.s32 1, %s2777
          $region116: #{vae_dense_forward.1} parent=102 // loop_footer_branch
            %2776 = sbr.rel target = $region112
          $region117: #{vae_dense_forward.1} parent=102 // loop_exit
            _
        $region103: #{vae_dense_forward.1} parent=98 // pred_fallthru
          _
      $region99: #{vae_dense_forward.1} parent=94 // pred_fallthru
        _
      %2786 = vnop
    $region95: #{vae_dense_forward.1} parent=1 // pred_fallthru
      _
    // Predicated region
    $region118: #{vae_dense_forward.1} parent=1 // pred_check
      _
    $region119: #{vae_dense_forward.1} parent=1 // pred_check_branch
      %2788 = sbr.rel (0) target = $region121
    $region120: #{vae_dense_forward.1} parent=1 // pred_region
      _
    $region121: #{vae_dense_forward.1} parent=1 // pred_fallthru
      _
    // Predicated region
    $region122: #{vae_dense_forward.1} parent=1 // pred_check
      _
    $region123: #{vae_dense_forward.1} parent=1 // pred_check_branch
      %2790 = sbr.rel (0) target = $region125
    $region124: #{vae_dense_forward.1} parent=1 // pred_region
      _
    $region125: #{vae_dense_forward.1} parent=1 // pred_fallthru
      _

</llo_original>
